<compile_context>
chip_gen: v7x
topology: tpu7x:2x2x1
jax: 0.10.0
libtpu: 0.0.40
codegen_flags: <defaults>
</compile_context>

<pallas_src>
import functools

import jax
import jax.numpy as jnp
from jax.experimental import pallas as pl
from jax.experimental.pallas import tpu as pltpu

_LANE = 128
_SUBLANE = 16                       # bf16 sublane packing granularity
_COMPUTE_DTYPE = jnp.bfloat16
_BN_EPS = 1e-5


def _round_up(x, m):
    return ((x + m - 1) // m) * m


def _pick_tile(total, pref, quantum):
    """Largest multiple of `quantum` that divides `total` and is <= max(pref, quantum)."""
    q = total // quantum
    cap = max(pref // quantum, 1)
    best = 1
    for d in range(1, q + 1):
        if q % d == 0 and d <= cap:
            best = d
    return best * quantum


def _cast_pad_2d(a, rows, cols, dtype=_COMPUTE_DTYPE):
    """Cast + zero-pad as one fused XLA pass; no-op if already conforming."""
    r, c = a.shape
    if a.dtype != dtype:
        a = a.astype(dtype)
    if r == rows and c == cols:
        return a
    return jnp.pad(a, ((0, rows - r), (0, cols - c)))


def _pad_bias(b, cols):
    b = b.astype(jnp.float32)
    if b.shape[0] != cols:
        b = jnp.pad(b, (0, cols - b.shape[0]))
    return b.reshape(1, cols)


def _compiler_params(semantics, block_bytes):
    limit = int(min(48 * 2**20, max(2 * block_bytes, 24 * 2**20)))
    return pltpu.CompilerParams(dimension_semantics=semantics,
                                vmem_limit_bytes=limit)


def _choose_mnk_tiles(M, Np, Kp, tm_pref, tn_pref, tk_pref):
    Mp = _round_up(M, _SUBLANE)
    tn = _pick_tile(Np, tn_pref, _LANE)
    tk = _pick_tile(Kp, tk_pref, _LANE)
    # Keep >= 2 blocks on at least one "parallel" axis so megacore / v7x's two
    # TensorCores actually get sharded work.
    if Np // tn < 2 and Mp // _SUBLANE >= 2:
        tm_pref = min(tm_pref, max(_SUBLANE, Mp // 2))
    tm = _pick_tile(Mp, tm_pref, _SUBLANE)
    return Mp, tm, tn, tk


# ---------------------------------------------------------------------------
# Pallas kernels
# ---------------------------------------------------------------------------
def _mm_bias_kernel(x_ref, w_ref, b_ref, o_ref, acc_ref, *, relu):
    """Tiled matmul + bias (+ReLU). Grid = (M/tm, N/tn, K/tk)."""
    k = pl.program_id(2)

    @pl.when(k == 0)
    def _():
        acc_ref[...] = jnp.zeros_like(acc_ref)

    acc_ref[...] += jnp.dot(x_ref[...], w_ref[...],
                            preferred_element_type=jnp.float32)

    @pl.when(k == pl.num_programs(2) - 1)
    def _():
        y = acc_ref[...] + b_ref[...]
        if relu:
            y = jnp.maximum(y, 0.0)
        o_ref[...] = y.astype(o_ref.dtype)


def _mm_bias_res_kernel(x_ref, w_ref, b_ref, r_ref, o_ref, acc_ref, *, relu):
    """Tiled matmul + bias + residual add (+ReLU). Grid = (M/tm, N/tn, K/tk)."""
    k = pl.program_id(2)

    @pl.when(k == 0)
    def _():
        acc_ref[...] = jnp.zeros_like(acc_ref)

    acc_ref[...] += jnp.dot(x_ref[...], w_ref[...],
                            preferred_element_type=jnp.float32)

    @pl.when(k == pl.num_programs(2) - 1)
    def _():
        y = acc_ref[...] + b_ref[...] + r_ref[...].astype(jnp.float32)
        if relu:
            y = jnp.maximum(y, 0.0)
        o_ref[...] = y.astype(o_ref.dtype)


def _dual_mm_bias_kernel(xa_ref, wa_ref, xb_ref, wb_ref, b_ref, o_ref, acc_ref,
                         *, relu, ka_steps):
    """Two K-tiled matmuls sharing one output tile and one f32 accumulator.

    The K grid axis first sweeps the ka_steps blocks of (xa @ wa) and then the
    remaining blocks of (xb @ wb); a single epilogue adds bias (+ReLU).
    Grid = (M/tm, N/tn, ka_steps + kb_steps).
    """
    k = pl.program_id(2)

    @pl.when(k == 0)
    def _():
        acc_ref[...] = jnp.zeros_like(acc_ref)

    @pl.when(k < ka_steps)
    def _():
        acc_ref[...] += jnp.dot(xa_ref[...], wa_ref[...],
                                preferred_element_type=jnp.float32)

    @pl.when(k >= ka_steps)
    def _():
        acc_ref[...] += jnp.dot(xb_ref[...], wb_ref[...],
                                preferred_element_type=jnp.float32)

    @pl.when(k == pl.num_programs(2) - 1)
    def _():
        y = acc_ref[...] + b_ref[...]
        if relu:
            y = jnp.maximum(y, 0.0)
        o_ref[...] = y.astype(o_ref.dtype)


# ---------------------------------------------------------------------------
# Pallas wrappers
# ---------------------------------------------------------------------------
def fused_matmul_bias(x, w_p, bias_p, n_out, residual=None, relu=True,
                      out_dtype=_COMPUTE_DTYPE, tm=512, tn=512, tk=1024):
    """y[:, :n_out] = (relu)(x @ w_p + bias_p [+ residual]).

    `w_p` (Kp, Np) bf16 and `bias_p` (1, Np) f32 are pre-padded at load time
    (Kp, Np multiples of 128).  x is (M, K) with K <= Kp.
    """
    M, K = x.shape
    Kp, Np = w_p.shape
    assert K <= Kp and n_out <= Np
    Mp, tm, tn, tk = _choose_mnk_tiles(M, Np, Kp, tm, tn, tk)
    xp = _cast_pad_2d(x, Mp, Kp)

    grid = (Mp // tm, Np // tn, Kp // tk)
    x_spec = pl.BlockSpec((tm, tk), lambda i, j, k: (i, k))
    w_spec = pl.BlockSpec((tk, tn), lambda i, j, k: (k, j))
    b_spec = pl.BlockSpec((1, tn), lambda i, j, k: (0, j))
    o_spec = pl.BlockSpec((tm, tn), lambda i, j, k: (i, j))
    out_shape = jax.ShapeDtypeStruct((Mp, Np), out_dtype)
    scratch = [pltpu.VMEM((tm, tn), jnp.float32)]
    out_bytes = jnp.dtype(out_dtype).itemsize
    block_bytes = (2 * 2 * (tm * tk + tk * tn) + 2 * tm * tn * out_bytes
                   + 4 * tm * tn + 2 * 4 * tn)
    cparams = _compiler_params(("parallel", "parallel", "arbitrary"), block_bytes)

    if residual is None:
        out = pl.pallas_call(
            functools.partial(_mm_bias_kernel, relu=relu),
            out_shape=out_shape, grid=grid,
            in_specs=[x_spec, w_spec, b_spec], out_specs=o_spec,
            scratch_shapes=scratch, compiler_params=cparams,
        )(xp, w_p, bias_p)
    else:
        rp = _cast_pad_2d(residual, Mp, Np)
        r_spec = pl.BlockSpec((tm, tn), lambda i, j, k: (i, j))
        out = pl.pallas_call(
            functools.partial(_mm_bias_res_kernel, relu=relu),
            out_shape=out_shape, grid=grid,
            in_specs=[x_spec, w_spec, b_spec, r_spec], out_specs=o_spec,
            scratch_shapes=scratch, compiler_params=cparams,
        )(xp, w_p, bias_p, rp)
    if Mp == M and Np == n_out:
        return out
    return out[:M, :n_out]


def fused_dual_matmul_bias(xa, wa_p, xb, wb_p, bias_p, n_out, relu=True,
                           out_dtype=jnp.float32, tm=512, tn=512, tk=1024):
    """y[:, :n_out] = relu(xa @ wa_p + xb @ wb_p + bias_p).

    Fuses the downsample shortcut into the final 1x1-conv kernel: shared M/N
    output tile, one K grid axis sweeping main-path then shortcut K blocks,
    one f32 VMEM accumulator, single bias+ReLU epilogue.
    """
    M, Ka = xa.shape
    Kap, Np = wa_p.shape
    Mb, Kb = xb.shape
    Kbp, Npb = wb_p.shape
    assert M == Mb and Np == Npb and Ka <= Kap and Kb <= Kbp and n_out <= Np

    Mp, tm, tn, tka = _choose_mnk_tiles(M, Np, Kap, tm, tn, tk)
    tkb = _pick_tile(Kbp, tk, _LANE)
    xa_p = _cast_pad_2d(xa, Mp, Kap)
    xb_p = _cast_pad_2d(xb, Mp, Kbp)

    ka_steps = Kap // tka
    kb_steps = Kbp // tkb
    grid = (Mp // tm, Np // tn, ka_steps + kb_steps)

    def a_idx(k):
        return jnp.minimum(k, ka_steps - 1)

    def b_idx(k):
        return jnp.maximum(k - ka_steps, 0)

    in_specs = [
        pl.BlockSpec((tm, tka), lambda i, j, k: (i, a_idx(k))),
        pl.BlockSpec((tka, tn), lambda i, j, k: (a_idx(k), j)),
        pl.BlockSpec((tm, tkb), lambda i, j, k: (i, b_idx(k))),
        pl.BlockSpec((tkb, tn), lambda i, j, k: (b_idx(k), j)),
        pl.BlockSpec((1, tn), lambda i, j, k: (0, j)),
    ]
    o_spec = pl.BlockSpec((tm, tn), lambda i, j, k: (i, j))
    out_bytes = jnp.dtype(out_dtype).itemsize
    block_bytes = (2 * 2 * (tm * (tka + tkb) + (tka + tkb) * tn)
                   + 2 * tm * tn * out_bytes + 4 * tm * tn + 2 * 4 * tn)
    cparams = _compiler_params(("parallel", "parallel", "arbitrary"), block_bytes)

    out = pl.pallas_call(
        functools.partial(_dual_mm_bias_kernel, relu=relu, ka_steps=ka_steps),
        out_shape=jax.ShapeDtypeStruct((Mp, Np), out_dtype),
        grid=grid, in_specs=in_specs, out_specs=o_spec,
        scratch_shapes=[pltpu.VMEM((tm, tn), jnp.float32)],
        compiler_params=cparams,
    )(xa_p, wa_p, xb_p, wb_p, bias_p)
    if Mp == M and Np == n_out:
        return out
    return out[:M, :n_out]


# ---------------------------------------------------------------------------
# Glue: im2col, weight reshaping, BN folding (load-time)
# ---------------------------------------------------------------------------
def _im2col_3x3(x, stride, padding, dilation):
    """x: (N, H, W, C) bf16 -> (N*Hout*Wout, 9*C), Hout, Wout.

    TODO(synk): stream the 9 taps through the conv2 matmul's K grid axis
    (element-offset / manual-DMA BlockSpecs over the padded NHWC activation)
    instead of materializing the tap-expanded patches array in HBM.
    """
    N, H, W, C = x.shape
    k = 3
    Hout = (H + 2 * padding - dilation * (k - 1) - 1) // stride + 1
    Wout = (W + 2 * padding - dilation * (k - 1) - 1) // stride + 1
    xp = jnp.pad(x, ((0, 0), (padding, padding), (padding, padding), (0, 0)))
    cols = []
    for kh in range(k):
        for kw in range(k):
            h0 = kh * dilation
            w0 = kw * dilation
            sl = xp[:, h0:h0 + stride * (Hout - 1) + 1:stride,
                       w0:w0 + stride * (Wout - 1) + 1:stride, :]
            cols.append(sl)
    patches = jnp.concatenate(cols, axis=-1)
    return patches.reshape(N * Hout * Wout, k * k * C), Hout, Wout


def _conv1x1_weight_to_2d(w):
    """PyTorch (C_out, C_in, 1, 1) -> (C_in, C_out)."""
    return jnp.transpose(w[:, :, 0, 0], (1, 0))


def _conv3x3_weight_to_2d(w, c_in, groups):
    """PyTorch (C_out, C_in/g, 3, 3) -> dense (9*C_in, C_out) matching im2col."""
    c_out = w.shape[0]
    if groups == 1:
        return jnp.transpose(w, (2, 3, 1, 0)).reshape(9 * c_in, c_out)
    # TODO(synk): groups > 1 should be a grid axis inside the conv2 matmul
    # (selecting the group's K/N blocks) instead of this dense zero-padded weight.
    cg_in = c_in // groups
    cg_out = c_out // groups
    w2d = jnp.zeros((9 * c_in, c_out), dtype=w.dtype)
    for g in range(groups):
        wg = w[g * cg_out:(g + 1) * cg_out]
        wt = jnp.transpose(wg, (2, 3, 1, 0))
        for kh in range(3):
            for kw in range(3):
                row0 = (kh * 3 + kw) * c_in + g * cg_in
                w2d = w2d.at[row0:row0 + cg_in,
                             g * cg_out:(g + 1) * cg_out].set(wt[kh, kw])
    return w2d


def _fold_bn(gamma, beta, mean, var, eps=_BN_EPS):
    scale = gamma / jnp.sqrt(var + eps)
    bias = beta - mean * scale
    return scale, bias


def prepare_bottleneck_params(params, cfg):
    """One-time (load-time) weight prep: fold BN into the conv weights, reshape
    to matmul layout, cast to bf16, zero-pad K/N to lane-dense multiples of 128,
    and pre-pad the f32 biases.  The forward path does no per-call weight work."""
    hid, out = cfg["hid"], cfg["out"]
    groups = cfg["groups"]

    def prep_w(w2d, scale):
        w2d = w2d * scale[None, :]
        kp = _round_up(w2d.shape[0], _LANE)
        np_ = _round_up(w2d.shape[1], _LANE)
        return _cast_pad_2d(w2d, kp, np_, _COMPUTE_DTYPE)

    s1, b1 = _fold_bn(**params["bn1"])
    s2, b2 = _fold_bn(**params["bn2"])
    s3, b3 = _fold_bn(**params["bn3"])

    prepped = dict(
        w1=prep_w(_conv1x1_weight_to_2d(params["w1"]), s1),
        b1=_pad_bias(b1, _round_up(hid, _LANE)),
        w2=prep_w(_conv3x3_weight_to_2d(params["w2"], c_in=hid, groups=groups), s2),
        b2=_pad_bias(b2, _round_up(hid, _LANE)),
        w3=prep_w(_conv1x1_weight_to_2d(params["w3"]), s3),
    )
    if cfg["has_downsample"]:
        sd, bd = _fold_bn(**params["bnd"])
        prepped["wd"] = prep_w(_conv1x1_weight_to_2d(params["wd"]), sd)
        prepped["b3"] = _pad_bias(b3 + bd, _round_up(out, _LANE))
    else:
        prepped["b3"] = _pad_bias(b3, _round_up(out, _LANE))
    return jax.tree_util.tree_map(jnp.asarray, prepped)


# ---------------------------------------------------------------------------
# Bottleneck module (parameters + forward)
# ---------------------------------------------------------------------------
def init_bottleneck_params(key, in_channels, out_channels, stride=1, padding=1,
                           groups=1, base_width=64):
    expansion = 4
    hid = int(out_channels * base_width / 64) * groups
    out = out_channels * expansion

    def bn_params(k, c):
        k1, k2, k3, k4 = jax.random.split(k, 4)
        return dict(
            gamma=1.0 + 0.1 * jax.random.normal(k1, (c,), jnp.float32),
            beta=0.1 * jax.random.normal(k2, (c,), jnp.float32),
            mean=0.1 * jax.random.normal(k3, (c,), jnp.float32),
            var=1.0 + 0.1 * jnp.abs(jax.random.normal(k4, (c,), jnp.float32)),
        )

    ks = jax.random.split(key, 8)
    params = dict(
        w1=0.1 * jax.random.normal(ks[0], (hid, in_channels, 1, 1), jnp.float32),
        bn1=bn_params(ks[1], hid),
        w2=0.1 * jax.random.normal(ks[2], (hid, hid // groups, 3, 3), jnp.float32),
        bn2=bn_params(ks[3], hid),
        w3=0.1 * jax.random.normal(ks[4], (out, hid, 1, 1), jnp.float32),
        bn3=bn_params(ks[5], out),
    )
    has_downsample = (stride != 1) or (in_channels != out)
    if has_downsample:
        params["wd"] = 0.1 * jax.random.normal(
            ks[6], (out, in_channels, 1, 1), jnp.float32)
        params["bnd"] = bn_params(ks[7], out)
    cfg = dict(in_channels=in_channels, hid=hid, out=out, stride=stride,
               padding=padding, groups=groups, has_downsample=has_downsample)
    return params, cfg


def bottleneck_forward(x_nchw, prepped, cfg):
    """x_nchw: (N, C_in, H, W) f32 -> (N, out_channels*4, Hout, Wout) f32."""
    stride, padding = cfg["stride"], cfg["padding"]
    cin, hid, out = cfg["in_channels"], cfg["hid"], cfg["out"]

    # TODO(synk): fold the NCHW<->NHWC boundary transposes into the first/last
    # kernels' index_maps / output layout instead of standalone XLA transposes.
    x = jnp.transpose(x_nchw, (0, 2, 3, 1)).astype(_COMPUTE_DTYPE)  # NHWC bf16
    N, H, W, _ = x.shape

    # conv1 (1x1, stride 1) + BN1 (scale pre-folded into weights) + ReLU
    h1 = fused_matmul_bias(x.reshape(N * H * W, cin), prepped["w1"],
                           prepped["b1"], n_out=hid, relu=True)
    h1 = h1.reshape(N, H, W, hid)

    # conv2 (3x3, stride, padding, dilation=padding per the reference
    # build_conv3, groups) + BN2 + ReLU.
    patches, Hout, Wout = _im2col_3x3(h1, stride=stride, padding=padding,
                                      dilation=padding)
    h2 = fused_matmul_bias(patches, prepped["w2"], prepped["b2"],
                           n_out=hid, relu=True)

    # conv3 (1x1) + BN3 + shortcut + final ReLU, in a single fused kernel.
    if cfg["has_downsample"]:
        # Shortcut = BN_d(1x1 conv, stride s).  The ::stride slice runs on the
        # already-bf16 NHWC activation (one pass, no separate cast).
        # TODO(synk): feed x via a strided BlockSpec index_map so the sliced
        # shortcut never materializes in HBM.
        x_ds = x[:, ::stride, ::stride, :].reshape(N * Hout * Wout, cin)
        y = fused_dual_matmul_bias(h2, prepped["w3"], x_ds, prepped["wd"],
                                   prepped["b3"], n_out=out, relu=True,
                                   out_dtype=jnp.float32)
    else:
        res = x.reshape(N * H * W, cin)   # identity shortcut (stride==1, cin==out)
        y = fused_matmul_bias(h2, prepped["w3"], prepped["b3"], n_out=out,
                              residual=res, relu=True, out_dtype=jnp.float32)

    y = y.reshape(N, Hout, Wout, out)
    return jnp.transpose(y, (0, 3, 1, 2))  # back to NCHW, already f32


# ---------------------------------------------------------------------------
# Pure-XLA f32 reference (mirrors the PyTorch module, inference-mode BN)
# ---------------------------------------------------------------------------
def _reference_forward(x_nchw, params, cfg):
    def bn(x, p):
        sh = (1, -1, 1, 1)
        scale = p["gamma"].reshape(sh) / jnp.sqrt(p["var"].reshape(sh) + _BN_EPS)
        return (x - p["mean"].reshape(sh)) * scale + p["beta"].reshape(sh)

    def conv(x, w, stride, padding, dilation, groups):
        return jax.lax.conv_general_dilated(
            x, w, window_strides=(stride, stride),
            padding=((padding, padding), (padding, padding)),
            rhs_dilation=(dilation, dilation),
            dimension_numbers=("NCHW", "OIHW", "NCHW"),
            feature_group_count=groups)

    s, p, g = cfg["stride"], cfg["padding"], cfg["groups"]
    h = jax.nn.relu(bn(conv(x_nchw, params["w1"], 1, 0, 1, 1), params["bn1"]))
    h = jax.nn.relu(bn(conv(h, params["w2"], s, p, p, g), params["bn2"]))
    h = bn(conv(h, params["w3"], 1, 0, 1, 1), params["bn3"])
    if cfg["has_downsample"]:
        c = bn(conv(x_nchw, params["wd"], s, 0, 1, 1), params["bnd"])
    else:
        c = x_nchw
    return jax.nn.relu(h + c)


# ---------------------------------------------------------------------------
if __name__ == "__main__":
    key = jax.random.PRNGKey(0)
    k_x, k_p = jax.random.split(key)

    N, C_in, H, W = 2, 4, 16, 16
    out_channels, stride, padding, groups = 4, 2, 1, 1

    x = jax.random.normal(k_x, (N, C_in, H, W), jnp.float32)
    params, cfg = init_bottleneck_params(k_p, C_in, out_channels,
                                         stride=stride, padding=padding,
                                         groups=groups)
    prepped = prepare_bottleneck_params(params, cfg)   # one-time weight prep

    fwd = jax.jit(functools.partial(bottleneck_forward, cfg=cfg))
    y = fwd(x, prepped)
    jax.block_until_ready(y)

    expected_hw = (H - 1) // stride + 1
    assert y.shape == (N, out_channels * 4, expected_hw, expected_hw), y.shape
    assert bool(jnp.all(y >= 0.0))                     # final ReLU

    # Numerical check vs. pure-XLA f32 reference (bf16 MXU operands -> loose tol).
    y_ref = _reference_forward(x, params, cfg)
    max_err = float(jnp.max(jnp.abs(y - y_ref)))
    assert max_err < 5e-2, f"max abs err vs reference: {max_err}"
    print("KERNEL_OK")
</pallas_src>

<mosaic_0001>
module attributes {stable_mosaic.version = 11 : i64} {
  func.func @_mm_bias_kernel(%arg0: i32, %arg1: i32, %arg2: i32, %arg3: memref<256x128xbf16, #tpu.memory_space<vmem>>, %arg4: memref<128x128xbf16, #tpu.memory_space<vmem>>, %arg5: memref<1x128xf32, #tpu.memory_space<vmem>>, %arg6: memref<256x128xbf16, #tpu.memory_space<vmem>>, %arg7: memref<256x128xf32, #tpu.memory_space<vmem>>) attributes {dimension_semantics = [#tpu.dimension_semantics<parallel>, #tpu.dimension_semantics<parallel>, #tpu.dimension_semantics<arbitrary>], iteration_bounds = array<i64: 2, 1, 1>, scalar_prefetch = 0 : i64, scratch_operands = 1 : i64, tpu.core_type = #tpu.core_type<tc>, window_params = [{transform_indices = @transform_0, window_bounds = array<i64: 256, 128>}, {transform_indices = @transform_1, window_bounds = array<i64: 128, 128>}, {transform_indices = @transform_2, window_bounds = array<i64: 1, 128>}, {transform_indices = @transform_3, window_bounds = array<i64: 256, 128>}]} {
    %c0_i32 = arith.constant 0 : i32
    %0 = arith.cmpi eq, %arg2, %c0_i32 : i32
    %1 = arith.extui %0 : i1 to i32
    %c0_i32_0 = arith.constant 0 : i32
    %2 = arith.cmpi ne, %1, %c0_i32_0 : i32
    scf.if %2 {
      %cst_10 = arith.constant 0.000000e+00 : f32
      %12 = vector.broadcast %cst_10 : f32 to vector<256x128xf32>
      %c0_11 = arith.constant 0 : index
      %c0_12 = arith.constant 0 : index
      %13 = vector.load %arg7[%c0_11, %c0_12] : memref<256x128xf32, #tpu.memory_space<vmem>>, vector<256x128xf32>
      tpu.vector_store %arg7[%c0_11, %c0_12], %12 {strides = array<i32>} : memref<256x128xf32, #tpu.memory_space<vmem>>, vector<256x128xf32>,
    } else {
    }
    %c0 = arith.constant 0 : index
    %c0_1 = arith.constant 0 : index
    %3 = vector.load %arg7[%c0, %c0_1] : memref<256x128xf32, #tpu.memory_space<vmem>>, vector<256x128xf32>
    %c0_2 = arith.constant 0 : index
    %c0_3 = arith.constant 0 : index
    %4 = vector.load %arg3[%c0_2, %c0_3] : memref<256x128xbf16, #tpu.memory_space<vmem>>, vector<256x128xbf16>
    %c0_4 = arith.constant 0 : index
    %c0_5 = arith.constant 0 : index
    %5 = vector.load %arg4[%c0_4, %c0_5] : memref<128x128xbf16, #tpu.memory_space<vmem>>, vector<128x128xbf16>
    %cst = arith.constant dense<0.000000e+00> : vector<256x128xf32>
    %6 = tpu.matmul %4, %5, %cst {dimension_numbers = #tpu.dot_dimension_numbers<[1], [0], [0], [1], [0, 0, 1, 1], [], []>} : vector<256x128xbf16>, vector<128x128xbf16>, vector<256x128xf32> -> vector<256x128xf32>
    %7 = arith.addf %3, %6 : vector<256x128xf32>
    %c0_6 = arith.constant 0 : index
    %c0_7 = arith.constant 0 : index
    %8 = vector.load %arg7[%c0_6, %c0_7] : memref<256x128xf32, #tpu.memory_space<vmem>>, vector<256x128xf32>
    tpu.vector_store %arg7[%c0_6, %c0_7], %7 {strides = array<i32>} : memref<256x128xf32, #tpu.memory_space<vmem>>, vector<256x128xf32>,
    %c0_i32_8 = arith.constant 0 : i32
    %9 = arith.cmpi eq, %arg2, %c0_i32_8 : i32
    %10 = arith.extui %9 : i1 to i32
    %c0_i32_9 = arith.constant 0 : i32
    %11 = arith.cmpi ne, %10, %c0_i32_9 : i32
    scf.if %11 {
      %c0_10 = arith.constant 0 : index
      %c0_11 = arith.constant 0 : index
      %12 = vector.load %arg7[%c0_10, %c0_11] : memref<256x128xf32, #tpu.memory_space<vmem>>, vector<256x128xf32>
      %c0_12 = arith.constant 0 : index
      %c0_13 = arith.constant 0 : index
      %13 = vector.load %arg5[%c0_12, %c0_13] : memref<1x128xf32, #tpu.memory_space<vmem>>, vector<1x128xf32>
      %14 = vector.broadcast %13 : vector<1x128xf32> to vector<256x128xf32>
      %15 = arith.addf %12, %14 : vector<256x128xf32>
      %cst_14 = arith.constant 0.000000e+00 : f32
      %16 = vector.broadcast %cst_14 : f32 to vector<256x128xf32>
      %17 = arith.maximumf %15, %16 : vector<256x128xf32>
      %18 = arith.truncf %17 : vector<256x128xf32> to vector<256x128xbf16>
      %c0_15 = arith.constant 0 : index
      %c0_16 = arith.constant 0 : index
      %19 = vector.load %arg6[%c0_15, %c0_16] : memref<256x128xbf16, #tpu.memory_space<vmem>>, vector<256x128xbf16>
      tpu.vector_store %arg6[%c0_15, %c0_16], %18 {strides = array<i32>} : memref<256x128xbf16, #tpu.memory_space<vmem>>, vector<256x128xbf16>,
    } else {
    }
    return
  }
  func.func @transform_0(%arg0: i32, %arg1: i32, %arg2: i32) -> (i32, i32) {
    %c0_i32 = arith.constant 0 : i32
    return %arg0, %arg2 : i32, i32
  }
  func.func @transform_1(%arg0: i32, %arg1: i32, %arg2: i32) -> (i32, i32) {
    %c0_i32 = arith.constant 0 : i32
    return %arg2, %arg1 : i32, i32
  }
  func.func @transform_2(%arg0: i32, %arg1: i32, %arg2: i32) -> (i32, i32) {
    %c0_i32 = arith.constant 0 : i32
    %c0_i32_0 = arith.constant 0 : i32
    return %c0_i32, %arg1 : i32, i32
  }
  func.func @transform_3(%arg0: i32, %arg1: i32, %arg2: i32) -> (i32, i32) {
    %c0_i32 = arith.constant 0 : i32
    return %arg0, %arg1 : i32, i32
  }
}

module attributes {stable_mosaic.version = 11 : i64} {
  func.func @_mm_bias_kernel(%arg0: i32, %arg1: i32, %arg2: i32, %arg3: memref<64x128xbf16, #tpu.memory_space<vmem>>, %arg4: memref<128x128xbf16, #tpu.memory_space<vmem>>, %arg5: memref<1x128xf32, #tpu.memory_space<vmem>>, %arg6: memref<64x128xbf16, #tpu.memory_space<vmem>>, %arg7: memref<64x128xf32, #tpu.memory_space<vmem>>) attributes {dimension_semantics = [#tpu.dimension_semantics<parallel>, #tpu.dimension_semantics<parallel>, #tpu.dimension_semantics<arbitrary>], iteration_bounds = array<i64: 2, 1, 1>, scalar_prefetch = 0 : i64, scratch_operands = 1 : i64, tpu.core_type = #tpu.core_type<tc>, window_params = [{transform_indices = @transform_0, window_bounds = array<i64: 64, 128>}, {transform_indices = @transform_1, window_bounds = array<i64: 128, 128>}, {transform_indices = @transform_2, window_bounds = array<i64: 1, 128>}, {transform_indices = @transform_3, window_bounds = array<i64: 64, 128>}]} {
    %c0_i32 = arith.constant 0 : i32
    %0 = arith.cmpi eq, %arg2, %c0_i32 : i32
    %1 = arith.extui %0 : i1 to i32
    %c0_i32_0 = arith.constant 0 : i32
    %2 = arith.cmpi ne, %1, %c0_i32_0 : i32
    scf.if %2 {
      %cst_10 = arith.constant 0.000000e+00 : f32
      %12 = vector.broadcast %cst_10 : f32 to vector<64x128xf32>
      %c0_11 = arith.constant 0 : index
      %c0_12 = arith.constant 0 : index
      %13 = vector.load %arg7[%c0_11, %c0_12] : memref<64x128xf32, #tpu.memory_space<vmem>>, vector<64x128xf32>
      tpu.vector_store %arg7[%c0_11, %c0_12], %12 {strides = array<i32>} : memref<64x128xf32, #tpu.memory_space<vmem>>, vector<64x128xf32>,
    } else {
    }
    %c0 = arith.constant 0 : index
    %c0_1 = arith.constant 0 : index
    %3 = vector.load %arg7[%c0, %c0_1] : memref<64x128xf32, #tpu.memory_space<vmem>>, vector<64x128xf32>
    %c0_2 = arith.constant 0 : index
    %c0_3 = arith.constant 0 : index
    %4 = vector.load %arg3[%c0_2, %c0_3] : memref<64x128xbf16, #tpu.memory_space<vmem>>, vector<64x128xbf16>
    %c0_4 = arith.constant 0 : index
    %c0_5 = arith.constant 0 : index
    %5 = vector.load %arg4[%c0_4, %c0_5] : memref<128x128xbf16, #tpu.memory_space<vmem>>, vector<128x128xbf16>
    %cst = arith.constant dense<0.000000e+00> : vector<64x128xf32>
    %6 = tpu.matmul %4, %5, %cst {dimension_numbers = #tpu.dot_dimension_numbers<[1], [0], [0], [1], [0, 0, 1, 1], [], []>} : vector<64x128xbf16>, vector<128x128xbf16>, vector<64x128xf32> -> vector<64x128xf32>
    %7 = arith.addf %3, %6 : vector<64x128xf32>
    %c0_6 = arith.constant 0 : index
    %c0_7 = arith.constant 0 : index
    %8 = vector.load %arg7[%c0_6, %c0_7] : memref<64x128xf32, #tpu.memory_space<vmem>>, vector<64x128xf32>
    tpu.vector_store %arg7[%c0_6, %c0_7], %7 {strides = array<i32>} : memref<64x128xf32, #tpu.memory_space<vmem>>, vector<64x128xf32>,
    %c0_i32_8 = arith.constant 0 : i32
    %9 = arith.cmpi eq, %arg2, %c0_i32_8 : i32
    %10 = arith.extui %9 : i1 to i32
    %c0_i32_9 = arith.constant 0 : i32
    %11 = arith.cmpi ne, %10, %c0_i32_9 : i32
    scf.if %11 {
      %c0_10 = arith.constant 0 : index
      %c0_11 = arith.constant 0 : index
      %12 = vector.load %arg7[%c0_10, %c0_11] : memref<64x128xf32, #tpu.memory_space<vmem>>, vector<64x128xf32>
      %c0_12 = arith.constant 0 : index
      %c0_13 = arith.constant 0 : index
      %13 = vector.load %arg5[%c0_12, %c0_13] : memref<1x128xf32, #tpu.memory_space<vmem>>, vector<1x128xf32>
      %14 = vector.broadcast %13 : vector<1x128xf32> to vector<64x128xf32>
      %15 = arith.addf %12, %14 : vector<64x128xf32>
      %cst_14 = arith.constant 0.000000e+00 : f32
      %16 = vector.broadcast %cst_14 : f32 to vector<64x128xf32>
      %17 = arith.maximumf %15, %16 : vector<64x128xf32>
      %18 = arith.truncf %17 : vector<64x128xf32> to vector<64x128xbf16>
      %c0_15 = arith.constant 0 : index
      %c0_16 = arith.constant 0 : index
      %19 = vector.load %arg6[%c0_15, %c0_16] : memref<64x128xbf16, #tpu.memory_space<vmem>>, vector<64x128xbf16>
      tpu.vector_store %arg6[%c0_15, %c0_16], %18 {strides = array<i32>} : memref<64x128xbf16, #tpu.memory_space<vmem>>, vector<64x128xbf16>,
    } else {
    }
    return
  }
  func.func @transform_0(%arg0: i32, %arg1: i32, %arg2: i32) -> (i32, i32) {
    %c0_i32 = arith.constant 0 : i32
    return %arg0, %arg2 : i32, i32
  }
  func.func @transform_1(%arg0: i32, %arg1: i32, %arg2: i32) -> (i32, i32) {
    %c0_i32 = arith.constant 0 : i32
    return %arg2, %arg1 : i32, i32
  }
  func.func @transform_2(%arg0: i32, %arg1: i32, %arg2: i32) -> (i32, i32) {
    %c0_i32 = arith.constant 0 : i32
    %c0_i32_0 = arith.constant 0 : i32
    return %c0_i32, %arg1 : i32, i32
  }
  func.func @transform_3(%arg0: i32, %arg1: i32, %arg2: i32) -> (i32, i32) {
    %c0_i32 = arith.constant 0 : i32
    return %arg0, %arg1 : i32, i32
  }
}

module attributes {stable_mosaic.version = 11 : i64} {
  func.func @_dual_mm_bias_kernel(%arg0: i32, %arg1: i32, %arg2: i32, %arg3: memref<64x128xbf16, #tpu.memory_space<vmem>>, %arg4: memref<128x128xbf16, #tpu.memory_space<vmem>>, %arg5: memref<64x128xbf16, #tpu.memory_space<vmem>>, %arg6: memref<128x128xbf16, #tpu.memory_space<vmem>>, %arg7: memref<1x128xf32, #tpu.memory_space<vmem>>, %arg8: memref<64x128xf32, #tpu.memory_space<vmem>>, %arg9: memref<64x128xf32, #tpu.memory_space<vmem>>) attributes {dimension_semantics = [#tpu.dimension_semantics<parallel>, #tpu.dimension_semantics<parallel>, #tpu.dimension_semantics<arbitrary>], iteration_bounds = array<i64: 2, 1, 2>, scalar_prefetch = 0 : i64, scratch_operands = 1 : i64, tpu.core_type = #tpu.core_type<tc>, window_params = [{transform_indices = @transform_0, window_bounds = array<i64: 64, 128>}, {transform_indices = @transform_1, window_bounds = array<i64: 128, 128>}, {transform_indices = @transform_2, window_bounds = array<i64: 64, 128>}, {transform_indices = @transform_3, window_bounds = array<i64: 128, 128>}, {transform_indices = @transform_4, window_bounds = array<i64: 1, 128>}, {transform_indices = @transform_5, window_bounds = array<i64: 64, 128>}]} {
    %c0_i32 = arith.constant 0 : i32
    %0 = arith.cmpi eq, %arg2, %c0_i32 : i32
    %1 = arith.extui %0 : i1 to i32
    %c0_i32_0 = arith.constant 0 : i32
    %2 = arith.cmpi ne, %1, %c0_i32_0 : i32
    scf.if %2 {
      %cst = arith.constant 0.000000e+00 : f32
      %12 = vector.broadcast %cst : f32 to vector<64x128xf32>
      %c0 = arith.constant 0 : index
      %c0_6 = arith.constant 0 : index
      %13 = vector.load %arg9[%c0, %c0_6] : memref<64x128xf32, #tpu.memory_space<vmem>>, vector<64x128xf32>
      tpu.vector_store %arg9[%c0, %c0_6], %12 {strides = array<i32>} : memref<64x128xf32, #tpu.memory_space<vmem>>, vector<64x128xf32>,
    } else {
    }
    %c1_i32 = arith.constant 1 : i32
    %3 = arith.cmpi slt, %arg2, %c1_i32 : i32
    %4 = arith.extui %3 : i1 to i32
    %c0_i32_1 = arith.constant 0 : i32
    %5 = arith.cmpi ne, %4, %c0_i32_1 : i32
    scf.if %5 {
      %c0 = arith.constant 0 : index
      %c0_6 = arith.constant 0 : index
      %12 = vector.load %arg9[%c0, %c0_6] : memref<64x128xf32, #tpu.memory_space<vmem>>, vector<64x128xf32>
      %c0_7 = arith.constant 0 : index
      %c0_8 = arith.constant 0 : index
      %13 = vector.load %arg3[%c0_7, %c0_8] : memref<64x128xbf16, #tpu.memory_space<vmem>>, vector<64x128xbf16>
      %c0_9 = arith.constant 0 : index
      %c0_10 = arith.constant 0 : index
      %14 = vector.load %arg4[%c0_9, %c0_10] : memref<128x128xbf16, #tpu.memory_space<vmem>>, vector<128x128xbf16>
      %cst = arith.constant dense<0.000000e+00> : vector<64x128xf32>
      %15 = tpu.matmul %13, %14, %cst {dimension_numbers = #tpu.dot_dimension_numbers<[1], [0], [0], [1], [0, 0, 1, 1], [], []>} : vector<64x128xbf16>, vector<128x128xbf16>, vector<64x128xf32> -> vector<64x128xf32>
      %16 = arith.addf %12, %15 : vector<64x128xf32>
      %c0_11 = arith.constant 0 : index
      %c0_12 = arith.constant 0 : index
      %17 = vector.load %arg9[%c0_11, %c0_12] : memref<64x128xf32, #tpu.memory_space<vmem>>, vector<64x128xf32>
      tpu.vector_store %arg9[%c0_11, %c0_12], %16 {strides = array<i32>} : memref<64x128xf32, #tpu.memory_space<vmem>>, vector<64x128xf32>,
    } else {
    }
    %c1_i32_2 = arith.constant 1 : i32
    %6 = arith.cmpi sge, %arg2, %c1_i32_2 : i32
    %7 = arith.extui %6 : i1 to i32
    %c0_i32_3 = arith.constant 0 : i32
    %8 = arith.cmpi ne, %7, %c0_i32_3 : i32
    scf.if %8 {
      %c0 = arith.constant 0 : index
      %c0_6 = arith.constant 0 : index
      %12 = vector.load %arg9[%c0, %c0_6] : memref<64x128xf32, #tpu.memory_space<vmem>>, vector<64x128xf32>
      %c0_7 = arith.constant 0 : index
      %c0_8 = arith.constant 0 : index
      %13 = vector.load %arg5[%c0_7, %c0_8] : memref<64x128xbf16, #tpu.memory_space<vmem>>, vector<64x128xbf16>
      %c0_9 = arith.constant 0 : index
      %c0_10 = arith.constant 0 : index
      %14 = vector.load %arg6[%c0_9, %c0_10] : memref<128x128xbf16, #tpu.memory_space<vmem>>, vector<128x128xbf16>
      %cst = arith.constant dense<0.000000e+00> : vector<64x128xf32>
      %15 = tpu.matmul %13, %14, %cst {dimension_numbers = #tpu.dot_dimension_numbers<[1], [0], [0], [1], [0, 0, 1, 1], [], []>} : vector<64x128xbf16>, vector<128x128xbf16>, vector<64x128xf32> -> vector<64x128xf32>
      %16 = arith.addf %12, %15 : vector<64x128xf32>
      %c0_11 = arith.constant 0 : index
      %c0_12 = arith.constant 0 : index
      %17 = vector.load %arg9[%c0_11, %c0_12] : memref<64x128xf32, #tpu.memory_space<vmem>>, vector<64x128xf32>
      tpu.vector_store %arg9[%c0_11, %c0_12], %16 {strides = array<i32>} : memref<64x128xf32, #tpu.memory_space<vmem>>, vector<64x128xf32>,
    } else {
    }
    %c1_i32_4 = arith.constant 1 : i32
    %9 = arith.cmpi eq, %arg2, %c1_i32_4 : i32
    %10 = arith.extui %9 : i1 to i32
    %c0_i32_5 = arith.constant 0 : i32
    %11 = arith.cmpi ne, %10, %c0_i32_5 : i32
    scf.if %11 {
      %c0 = arith.constant 0 : index
      %c0_6 = arith.constant 0 : index
      %12 = vector.load %arg9[%c0, %c0_6] : memref<64x128xf32, #tpu.memory_space<vmem>>, vector<64x128xf32>
      %c0_7 = arith.constant 0 : index
      %c0_8 = arith.constant 0 : index
      %13 = vector.load %arg7[%c0_7, %c0_8] : memref<1x128xf32, #tpu.memory_space<vmem>>, vector<1x128xf32>
      %14 = vector.broadcast %13 : vector<1x128xf32> to vector<64x128xf32>
      %15 = arith.addf %12, %14 : vector<64x128xf32>
      %cst = arith.constant 0.000000e+00 : f32
      %16 = vector.broadcast %cst : f32 to vector<64x128xf32>
      %17 = arith.maximumf %15, %16 : vector<64x128xf32>
      %c0_9 = arith.constant 0 : index
      %c0_10 = arith.constant 0 : index
      %18 = vector.load %arg8[%c0_9, %c0_10] : memref<64x128xf32, #tpu.memory_space<vmem>>, vector<64x128xf32>
      tpu.vector_store %arg8[%c0_9, %c0_10], %17 {strides = array<i32>} : memref<64x128xf32, #tpu.memory_space<vmem>>, vector<64x128xf32>,
    } else {
    }
    return
  }
  func.func @transform_0(%arg0: i32, %arg1: i32, %arg2: i32) -> (i32, i32) {
    %c0_i32 = arith.constant 0 : i32
    %0 = arith.minsi %arg2, %c0_i32 : i32
    %c0_i32_0 = arith.constant 0 : i32
    return %arg0, %0 : i32, i32
  }
  func.func @transform_1(%arg0: i32, %arg1: i32, %arg2: i32) -> (i32, i32) {
    %c0_i32 = arith.constant 0 : i32
    %0 = arith.minsi %arg2, %c0_i32 : i32
    %c0_i32_0 = arith.constant 0 : i32
    return %0, %arg1 : i32, i32
  }
  func.func @transform_2(%arg0: i32, %arg1: i32, %arg2: i32) -> (i32, i32) {
    %c1_i32 = arith.constant 1 : i32
    %0 = arith.subi %arg2, %c1_i32 : i32
    %c0_i32 = arith.constant 0 : i32
    %1 = arith.maxsi %0, %c0_i32 : i32
    %c0_i32_0 = arith.constant 0 : i32
    return %arg0, %1 : i32, i32
  }
  func.func @transform_3(%arg0: i32, %arg1: i32, %arg2: i32) -> (i32, i32) {
    %c1_i32 = arith.constant 1 : i32
    %0 = arith.subi %arg2, %c1_i32 : i32
    %c0_i32 = arith.constant 0 : i32
    %1 = arith.maxsi %0, %c0_i32 : i32
    %c0_i32_0 = arith.constant 0 : i32
    return %1, %arg1 : i32, i32
  }
  func.func @transform_4(%arg0: i32, %arg1: i32, %arg2: i32) -> (i32, i32) {
    %c0_i32 = arith.constant 0 : i32
    %c0_i32_0 = arith.constant 0 : i32
    return %c0_i32, %arg1 : i32, i32
  }
  func.func @transform_5(%arg0: i32, %arg1: i32, %arg2: i32) -> (i32, i32) {
    %c0_i32 = arith.constant 0 : i32
    return %arg0, %arg1 : i32, i32
  }
}

</mosaic_0001>

<llo_original>
// kernel: bottleneck_forward.4
$region0: #{bottleneck_forward.4}
  #allocation0 [shape = 'u32[]', space=smem, size = 0x4, offset = 0x4, fixed_abs, tag = 'smem constant byte address 0x4 - core index']
  #allocation1 [shape = 'u32[144,128]{1,0:T(1,128)}', space=vmem, size = 0x12000, scoped, tag = 'internal scratch']
  #allocation2 [shape = 'f32[64,128]{1,0:T(8,128)}', space=vmem, size = 0x8000, scoped, tag = 'scratch operand']
  %s0 = inlined_call_operand.vmem [shape: bf16[128,128], index: 0, kind: input, shape index: {}]
  %s1 = inlined_call_operand.vmem [shape: bf16[128,128], index: 1, kind: input, shape index: {}]
  %s2 = inlined_call_operand.vmem [shape: f32[1,128], index: 2, kind: input, shape index: {}]
  %s3 = inlined_call_operand.vmem [shape: bf16[128,128], index: 3, kind: output, shape index: {}]
  %s4 = sld [smem:[#allocation0]]
  $region53: #{bottleneck_forward.4} parent=0
    _
  %s6 = ssub.s32 1, %s4
  %s7 = scalar_select 0, %s6, %s4
  loop: start=0, step=1, limit=4
  $region2: #{bottleneck_forward.4} parent=0 // loop_pre_header
    _
  $region3: #{bottleneck_forward.4} parent=0 // loop_header
    %s9 = sphi 0, %s13
    %p10 = scmp.ge.s32.totalorder %s9, 4
    %s16 = sphi 0, %s35
    %s17 = sphi 0, %s31
    %s18 = sphi 0, %s27
    %s19 = sphi 0, %s16
    %s20 = sphi 0, %s17
    %s21 = sphi 0, %s18
    %s22 = sphi 0, %s19
    %s23 = sphi 0, %s20
    %s24 = sphi 0, %s21
    %s40 = sphi 0, %s42
    %s43 = sphi 0, %s40
    %s44 = sphi 0, %s43
    %s60 = sphi 0, %s44
    %s68 = sphi 0, %s70
    %s71 = sphi 0, %s68
    %s72 = sphi 0, %s71
    %s88 = sphi 0, %s72
    %s94 = sphi 0, %s96
    %s97 = sphi 0, %s94
    %s98 = sphi 0, %s97
    %s114 = sphi 0, %s98
    %s122 = sphi 0, %s124
    %s125 = sphi 0, %s122
    %s126 = sphi 0, %s125
    %s142 = sphi 0, %s126
  $region4: #{bottleneck_forward.4} parent=0 // loop_header_branch
    %12 = sbr.rel (%p10) target = $region8
  $region5: #{bottleneck_forward.4} parent=0 // loop_body
    %s14 = ssub.s32 %s9, 1
    %s15 = ssub.s32 %s9, 2
    %s25 = sadd.s32 1, %s18
    %p26 = scmp.ge.s32.totalorder %s25, 1
    %s27 = scalar_select %p26, 0, %s25
    %s28 = sadd.s32 1, %s17
    %s29 = scalar_select %p26, %s28, %s17
    %p30 = scmp.ge.s32.totalorder %s29, 1
    %s31 = scalar_select %p30, 0, %s29
    %s32 = sadd.s32 1, %s16
    %s33 = scalar_select %p30, %s32, %s16
    %p34 = scmp.ge.s32.totalorder %s33, 2
    %s35 = scalar_select %p34, 0, %s33
    %s36 = ssub.s32 %s16, %s35
    %s37 = ssub.s32 %s18, %s27
    %s38 = sor.u32 %s36, %s37
    %p39 = scmp.eq.s32.totalorder %s38, 0
    %s41 = sadd.s32 %s40, 1
    %s42 = scalar_select %p39, %s40, %s41
    %p45 = pneg %p39
    %p46 = scmp.eq.s32.totalorder %s9, 1
    %p47 = por %p45, %p46
    %p48 = scmp.ne.s32.totalorder %s40, %s43
    %p49 = scmp.eq.s32.totalorder %s9, 0
    %p50 = por %p48, %p49
    %p51 = scmp.ne.s32.totalorder %s40, %s43
    %p52 = scmp.eq.s32.totalorder %s14, 1
    %p53 = por %p51, %p52
    %p54 = scmp.ne.s32.totalorder %s43, %s44
    %p55 = scmp.eq.s32.totalorder %s14, 0
    %p56 = por %p54, %p55
    %p57 = scmp.ne.s32.totalorder %s43, %s44
    %p58 = scmp.eq.s32.totalorder %s15, 1
    %p59 = por %p57, %p58
    %p61 = scmp.ne.s32.totalorder %s44, %s60
    %p62 = scmp.eq.s32.totalorder %s15, 0
    %p63 = por %p61, %p62
    %s64 = ssub.s32 %s18, %s27
    %s65 = ssub.s32 %s17, %s31
    %s66 = sor.u32 %s64, %s65
    %p67 = scmp.eq.s32.totalorder %s66, 0
    %s69 = sadd.s32 %s68, 1
    %s70 = scalar_select %p67, %s68, %s69
    %p73 = pneg %p67
    %p74 = scmp.eq.s32.totalorder %s9, 1
    %p75 = por %p73, %p74
    %p76 = scmp.ne.s32.totalorder %s68, %s71
    %p77 = scmp.eq.s32.totalorder %s9, 0
    %p78 = por %p76, %p77
    %p79 = scmp.ne.s32.totalorder %s68, %s71
    %p80 = scmp.eq.s32.totalorder %s14, 1
    %p81 = por %p79, %p80
    %p82 = scmp.ne.s32.totalorder %s71, %s72
    %p83 = scmp.eq.s32.totalorder %s14, 0
    %p84 = por %p82, %p83
    %p85 = scmp.ne.s32.totalorder %s71, %s72
    %p86 = scmp.eq.s32.totalorder %s15, 1
    %p87 = por %p85, %p86
    %p89 = scmp.ne.s32.totalorder %s72, %s88
    %p90 = scmp.eq.s32.totalorder %s15, 0
    %p91 = por %p89, %p90
    %s92 = ssub.s32 %s17, %s31
    %p93 = scmp.eq.s32.totalorder %s92, 0
    %s95 = sadd.s32 %s94, 1
    %s96 = scalar_select %p93, %s94, %s95
    %p99 = pneg %p93
    %p100 = scmp.eq.s32.totalorder %s9, 1
    %p101 = por %p99, %p100
    %p102 = scmp.ne.s32.totalorder %s94, %s97
    %p103 = scmp.eq.s32.totalorder %s9, 0
    %p104 = por %p102, %p103
    %p105 = scmp.ne.s32.totalorder %s94, %s97
    %p106 = scmp.eq.s32.totalorder %s14, 1
    %p107 = por %p105, %p106
    %p108 = scmp.ne.s32.totalorder %s97, %s98
    %p109 = scmp.eq.s32.totalorder %s14, 0
    %p110 = por %p108, %p109
    %p111 = scmp.ne.s32.totalorder %s97, %s98
    %p112 = scmp.eq.s32.totalorder %s15, 1
    %p113 = por %p111, %p112
    %p115 = scmp.ne.s32.totalorder %s98, %s114
    %p116 = scmp.eq.s32.totalorder %s15, 0
    %p117 = por %p115, %p116
    %s118 = ssub.s32 %s16, %s35
    %s119 = ssub.s32 %s17, %s31
    %s120 = sor.u32 %s118, %s119
    %p121 = scmp.eq.s32.totalorder %s120, 0
    %s123 = sadd.s32 %s122, 1
    %s124 = scalar_select %p121, %s122, %s123
    %p127 = pneg %p121
    %p128 = scmp.eq.s32.totalorder %s9, 1
    %p129 = por %p127, %p128
    %p130 = scmp.ne.s32.totalorder %s122, %s125
    %p131 = scmp.eq.s32.totalorder %s9, 0
    %p132 = por %p130, %p131
    %p133 = scmp.ne.s32.totalorder %s122, %s125
    %p134 = scmp.eq.s32.totalorder %s14, 1
    %p135 = por %p133, %p134
    %p136 = scmp.ne.s32.totalorder %s125, %s126
    %p137 = scmp.eq.s32.totalorder %s14, 0
    %p138 = por %p136, %p137
    %p139 = scmp.ne.s32.totalorder %s125, %s126
    %p140 = scmp.eq.s32.totalorder %s15, 1
    %p141 = por %p139, %p140
    %p143 = scmp.ne.s32.totalorder %s126, %s142
    %p144 = scmp.eq.s32.totalorder %s15, 0
    %p145 = por %p143, %p144
    %p146 = scmp.le.s32.totalorder 1, %s9
    %p147 = scmp.lt.s32.totalorder %s9, 3
    %p148 = pnand %p146, %p147
    %p149 = pneg %p148
    // Predicated region
    $region9: #{bottleneck_forward.4} parent=5 // pred_check
      _
    $region10: #{bottleneck_forward.4} parent=5 // pred_check_branch
      %151 = sbr.rel (%p148) target = $region12
    $region11: #{bottleneck_forward.4} parent=5 // pred_region
      %s152 = ssub.s32 %s9, 1
      // Predicated region
      $region13: #{bottleneck_forward.4} parent=11 // pred_check
        %p153 = pneg %p84
      $region14: #{bottleneck_forward.4} parent=11 // pred_check_branch
        %155 = sbr.rel (%p153) target = $region16
      $region15: #{bottleneck_forward.4} parent=11 // pred_region
        %s156 = smul.u32 16, %s21
        %p157 = scmp.lt.s32.totalorder %s156, 15
        %s158 = scalar_select %p157, %s156, 15
        %p159 = scmp.lt.s32.totalorder %s20, 0
        %s160 = scalar_select %p159, %s20, 0
        %s161 = sadd.s32 %s160, %s158
        %s162 = smul.addr %s161, 4
        %s163 = scalar_lea.vmem %s1, %s162
        %s164 = smul.u32 16, %s21
      $region16: #{bottleneck_forward.4} parent=11 // pred_fallthru
        _
      // Predicated region
      $region17: #{bottleneck_forward.4} parent=11 // pred_check
        %p165 = pneg %p110
      $region18: #{bottleneck_forward.4} parent=11 // pred_check_branch
        %167 = sbr.rel (%p165) target = $region20
      $region19: #{bottleneck_forward.4} parent=11 // pred_region
        %p168 = scmp.lt.s32.totalorder %s20, 0
        %s169 = scalar_select %p168, %s20, 0
        %s170 = scalar_lea.vmem %s2, %s169
      $region20: #{bottleneck_forward.4} parent=11 // pred_fallthru
        _
    $region12: #{bottleneck_forward.4} parent=5 // pred_fallthru
      _
    %p171 = scmp.lt.s32.totalorder %s9, 2
    // Predicated region
    $region21: #{bottleneck_forward.4} parent=5 // pred_check
      %p172 = pneg %p171
    $region22: #{bottleneck_forward.4} parent=5 // pred_check_branch
      %174 = sbr.rel (%p172) target = $region24
    $region23: #{bottleneck_forward.4} parent=5 // pred_region
      // Predicated region
      $region25: #{bottleneck_forward.4} parent=23 // pred_check
        %p175 = pneg %p50
      $region26: #{bottleneck_forward.4} parent=23 // pred_check_branch
        %177 = sbr.rel (%p175) target = $region28
      $region27: #{bottleneck_forward.4} parent=23 // pred_region
        %s178 = smul.u32 8, %s16
        %p179 = scmp.lt.s32.totalorder %s178, 15
        %s180 = scalar_select %p179, %s178, 15
        %p181 = scmp.lt.s32.totalorder %s18, 0
        %s182 = scalar_select %p181, %s18, 0
        %s183 = sadd.s32 %s182, %s180
        %s184 = smul.addr %s183, 4
        %s185 = scalar_lea.vmem %s0, %s184
        %s186 = smul.u32 8, %s16
      $region28: #{bottleneck_forward.4} parent=23 // pred_fallthru
        _
    $region24: #{bottleneck_forward.4} parent=5 // pred_fallthru
      _
    %p187 = scmp.le.s32.totalorder 1, %s9
    %p188 = scmp.lt.s32.totalorder %s9, 3
    %p189 = pnand %p187, %p188
    %p190 = pneg %p189
    // Predicated region
    $region29: #{bottleneck_forward.4} parent=5 // pred_check
      _
    $region30: #{bottleneck_forward.4} parent=5 // pred_check_branch
      %192 = sbr.rel (%p189) target = $region32
    $region31: #{bottleneck_forward.4} parent=5 // pred_region
      %s193 = ssub.s32 %s9, 1
      %s194 = smul.u32 8, %s19
      %p195 = scmp.lt.s32.totalorder %s194, 15
      %s196 = scalar_select %p195, %s194, 15
      %p197 = scmp.lt.s32.totalorder %s21, 0
      %s198 = scalar_select %p197, %s21, 0
      %s199 = sadd.s32 %s198, %s196
      %s200 = smul.addr %s199, 4
      %s201 = scalar_lea.vmem %s0, %s200
      %p202 = pneg %p56
      %p203 = pneg %p53
      %s204 = smul.u32 16, %s21
      %p205 = scmp.lt.s32.totalorder %s204, 15
      %s206 = scalar_select %p205, %s204, 15
      %p207 = scmp.lt.s32.totalorder %s20, 0
      %s208 = scalar_select %p207, %s20, 0
      %s209 = sadd.s32 %s208, %s206
      %s210 = smul.addr %s209, 4
      %s211 = scalar_lea.vmem %s1, %s210
      %p212 = pneg %p84
      %p213 = pneg %p81
      %p214 = scmp.lt.s32.totalorder %s20, 0
      %s215 = scalar_select %p214, %s20, 0
      %s216 = scalar_lea.vmem %s2, %s215
      %p217 = pneg %p110
      %p218 = pneg %p107
      %p219 = pneg %p138
      %p220 = pneg %p135
      %s221 = smul.u32 8, %s19
      %p222 = scmp.lt.s32.totalorder %s221, 15
      %s223 = scalar_select %p222, %s221, 15
      %p224 = scmp.lt.s32.totalorder %s20, 0
      %s225 = scalar_select %p224, %s20, 0
      %s226 = sadd.s32 %s225, %s223
      %s227 = smul.addr %s226, 4
      %s228 = scalar_lea.vmem %s3, %s227
      %s229 = smul.u32 8, %s19
      %p230 = scmp.lt.s32.totalorder %s229, 15
      %s231 = scalar_select %p230, %s229, 15
      %p232 = scmp.lt.s32.totalorder %s21, 0
      %s233 = scalar_select %p232, %s21, 0
      %s234 = sadd.s32 %s233, %s231
      %s235 = smul.addr %s234, 4
      %s236 = scalar_lea.vmem %s0, %s235
      %s237 = smul.u32 8, %s19
      %s238 = smul.u32 16, %s21
      %p239 = scmp.lt.s32.totalorder %s238, 15
      %s240 = scalar_select %p239, %s238, 15
      %p241 = scmp.lt.s32.totalorder %s20, 0
      %s242 = scalar_select %p241, %s20, 0
      %s243 = sadd.s32 %s242, %s240
      %s244 = smul.addr %s243, 4
      %s245 = scalar_lea.vmem %s1, %s244
      %s246 = smul.u32 16, %s21
      %p247 = scmp.lt.s32.totalorder %s20, 0
      %s248 = scalar_select %p247, %s20, 0
      %s249 = scalar_lea.vmem %s2, %s248
      %s250 = smul.u32 8, %s19
      %p251 = scmp.lt.s32.totalorder %s250, 15
      %s252 = scalar_select %p251, %s250, 15
      %p253 = scmp.lt.s32.totalorder %s20, 0
      %s254 = scalar_select %p253, %s20, 0
      %s255 = sadd.s32 %s254, %s252
      %s256 = smul.addr %s255, 4
      %s257 = scalar_lea.vmem %s3, %s256
      %s258 = smul.u32 8, %s19
      %p260 = scmp.eq.s32.totalorder %s21, 0
      // Predicated region
      $region33: #{bottleneck_forward.4} parent=31 // pred_check
        %p261 = pneg %p260
      $region34: #{bottleneck_forward.4} parent=31 // pred_check_branch
        %263 = sbr.rel (%p261) target = $region36
      $region35: #{bottleneck_forward.4} parent=31 // pred_region
        %264 = vst [vmem:[#allocation2] sm:$0xff] 0.0
        %265 = vst [vmem:[#allocation2 + $0x8] sm:$0xff] 0.0
        %266 = vst [vmem:[#allocation2 + $0x10] sm:$0xff] 0.0
        %267 = vst [vmem:[#allocation2 + $0x18] sm:$0xff] 0.0
        %268 = vst [vmem:[#allocation2 + $0x20] sm:$0xff] 0.0
        %269 = vst [vmem:[#allocation2 + $0x28] sm:$0xff] 0.0
        %270 = vst [vmem:[#allocation2 + $0x30] sm:$0xff] 0.0
        %271 = vst [vmem:[#allocation2 + $0x38] sm:$0xff] 0.0
      $region36: #{bottleneck_forward.4} parent=31 // pred_fallthru
        _
      %v272 = vld [vmem:[#allocation2] sm:$0xff]
      %v273 = vld [vmem:[#allocation2 + $0x8] sm:$0xff]
      %v274 = vld [vmem:[#allocation2 + $0x10] sm:$0xff]
      %v275 = vld [vmem:[#allocation2 + $0x18] sm:$0xff]
      %v276 = vld [vmem:[#allocation2 + $0x20] sm:$0xff]
      %v277 = vld [vmem:[#allocation2 + $0x28] sm:$0xff]
      %v278 = vld [vmem:[#allocation2 + $0x30] sm:$0xff]
      %v279 = vld [vmem:[#allocation2 + $0x38] sm:$0xff]
      %v280 = vld [vmem:[%s236] sm:$0xf]
      %v281 = vld [vmem:[%s236 + $0x4] sm:$0xf]
      %v282 = vld [vmem:[%s236 + $0x8] sm:$0xf]
      %v283 = vld [vmem:[%s236 + $0xc] sm:$0xf]
      %v284 = vld [vmem:[%s236 + $0x10] sm:$0xf]
      %v285 = vld [vmem:[%s236 + $0x14] sm:$0xf]
      %v286 = vld [vmem:[%s236 + $0x18] sm:$0xf]
      %v287 = vld [vmem:[%s236 + $0x1c] sm:$0xf]
      %v288 = vld [vmem:[%s245] sm:$0xf]
      %v289 = vld [vmem:[%s245 + $0x4] sm:$0xf]
      %v290 = vld [vmem:[%s245 + $0x8] sm:$0xf]
      %v291 = vld [vmem:[%s245 + $0xc] sm:$0xf]
      %v292 = vld [vmem:[%s245 + $0x10] sm:$0xf]
      %v293 = vld [vmem:[%s245 + $0x14] sm:$0xf]
      %v294 = vld [vmem:[%s245 + $0x18] sm:$0xf]
      %v295 = vld [vmem:[%s245 + $0x1c] sm:$0xf]
      %v296 = vld [vmem:[%s245 + $0x20] sm:$0xf]
      %v297 = vld [vmem:[%s245 + $0x24] sm:$0xf]
      %v298 = vld [vmem:[%s245 + $0x28] sm:$0xf]
      %v299 = vld [vmem:[%s245 + $0x2c] sm:$0xf]
      %v300 = vld [vmem:[%s245 + $0x30] sm:$0xf]
      %v301 = vld [vmem:[%s245 + $0x34] sm:$0xf]
      %v302 = vld [vmem:[%s245 + $0x38] sm:$0xf]
      %v303 = vld [vmem:[%s245 + $0x3c] sm:$0xf]
      %v312 = vunpack.c.l.b16 %v280
      %v313 = vunpack.c.l.b16 %v281
      %v314 = vunpack.c.l.b16 %v282
      %v315 = vunpack.c.l.b16 %v283
      %v316 = vunpack.c.l.b16 %v284
      %v317 = vunpack.c.l.b16 %v285
      %v318 = vunpack.c.l.b16 %v286
      %v319 = vunpack.c.l.b16 %v287
      %v320 = vpack.c.b16 %v313, %v312
      %v321 = vpack.c.b16 %v315, %v314
      %v322 = vpack.c.b16 %v317, %v316
      %v323 = vpack.c.b16 %v319, %v318
      %v344 = vunpack.c.l.b16 %v288
      %v345 = vunpack.c.l.b16 %v289
      %v346 = vunpack.c.l.b16 %v290
      %v347 = vunpack.c.l.b16 %v291
      %v348 = vunpack.c.l.b16 %v292
      %v349 = vunpack.c.l.b16 %v293
      %v350 = vunpack.c.l.b16 %v294
      %v351 = vunpack.c.l.b16 %v295
      %v352 = vunpack.c.l.b16 %v296
      %v353 = vunpack.c.l.b16 %v297
      %v354 = vunpack.c.l.b16 %v298
      %v355 = vunpack.c.l.b16 %v299
      %v356 = vunpack.c.l.b16 %v300
      %v357 = vunpack.c.l.b16 %v301
      %v358 = vunpack.c.l.b16 %v302
      %v359 = vunpack.c.l.b16 %v303
      %v360 = vpack.c.b16 %v345, %v344
      %v361 = vpack.c.b16 %v347, %v346
      %v362 = vpack.c.b16 %v349, %v348
      %v363 = vpack.c.b16 %v351, %v350
      %v364 = vpack.c.b16 %v353, %v352
      %v365 = vpack.c.b16 %v355, %v354
      %v366 = vpack.c.b16 %v357, %v356
      %v367 = vpack.c.b16 %v359, %v358
      %376 = vmatprep.subr.bf16.mxu0 0
      %377 = vmatpush1.bf16.msra.mxu0 %v360
      %378 = vmatprep.subr.bf16.mxu0 0
      %379 = vmatpush1.bf16.msra.mxu0 %v361
      %380 = vmatprep.subr.bf16.mxu0 0
      %381 = vmatpush1.bf16.msra.mxu0 %v362
      %382 = vmatprep.subr.bf16.mxu0 0
      %383 = vmatpush1.bf16.msra.mxu0 %v363
      %384 = vmatprep.subr.bf16.mxu0 0
      %385 = vmatpush1.bf16.msra.mxu0 %v364
      %386 = vmatprep.subr.bf16.mxu0 0
      %387 = vmatpush1.bf16.msra.mxu0 %v365
      %388 = vmatprep.subr.bf16.mxu0 0
      %389 = vmatpush1.bf16.msra.mxu0 %v366
      %390 = vmatprep.subr.bf16.mxu0 0
      %391 = vmatpush1.bf16.msra.mxu0 %v367
      %392 = vmatprep.subr.bf16.mxu0 0
      %393 = vmatpush1.bf16.msra.mxu0 0
      %394 = vmatprep.subr.bf16.mxu0 0
      %395 = vmatpush1.bf16.msra.mxu0 0
      %396 = vmatprep.subr.bf16.mxu0 0
      %397 = vmatpush1.bf16.msra.mxu0 0
      %398 = vmatprep.subr.bf16.mxu0 0
      %399 = vmatpush1.bf16.msra.mxu0 0
      %400 = vmatprep.subr.bf16.mxu0 0
      %401 = vmatpush1.bf16.msra.mxu0 0
      %402 = vmatprep.subr.bf16.mxu0 0
      %403 = vmatpush1.bf16.msra.mxu0 0
      %404 = vmatprep.subr.bf16.mxu0 0
      %405 = vmatpush1.bf16.msra.mxu0 0
      %406 = vmatprep.subr.bf16.mxu0 0
      %407 = vmatpush1.bf16.msra.mxu0 0
      %408 = vmatprep.mubr.bf16.mxu0 0
      %409 = vmatmul.mubr.bf16.gmra.mrb[0].mxu0 %v320
      %v410 = vpop.f32.mrb[0].mxu0
      %v411 = vadd.f32 0.0, %v410
      %v412 = vpop.f32.mrb[0].mxu0
      %v413 = vpop.f32.mrb[0].mxu0
      %v414 = vadd.f32 0.0, %v413
      %v415 = vpop.f32.mrb[0].mxu0
      %416 = vmatprep.mubr.bf16.mxu0 0
      %417 = vmatmul.mubr.bf16.gmra.mrb[0].mxu0 %v321
      %v418 = vpop.f32.mrb[0].mxu0
      %v419 = vadd.f32 0.0, %v418
      %v420 = vpop.f32.mrb[0].mxu0
      %v421 = vpop.f32.mrb[0].mxu0
      %v422 = vadd.f32 0.0, %v421
      %v423 = vpop.f32.mrb[0].mxu0
      %424 = vmatprep.mubr.bf16.mxu0 0
      %425 = vmatmul.mubr.bf16.gmra.mrb[0].mxu0 %v322
      %v426 = vpop.f32.mrb[0].mxu0
      %v427 = vadd.f32 0.0, %v426
      %v428 = vpop.f32.mrb[0].mxu0
      %v429 = vpop.f32.mrb[0].mxu0
      %v430 = vadd.f32 0.0, %v429
      %v431 = vpop.f32.mrb[0].mxu0
      %432 = vmatprep.mubr.bf16.mxu0 0
      %433 = vmatmul.mubr.bf16.gmra.mrb[0].mxu0 %v323
      %v434 = vpop.f32.mrb[0].mxu0
      %v435 = vadd.f32 0.0, %v434
      %v436 = vpop.f32.mrb[0].mxu0
      %v437 = vpop.f32.mrb[0].mxu0
      %v438 = vadd.f32 0.0, %v437
      %v439 = vpop.f32.mrb[0].mxu0
      %440 = vdwg.mxu0
      %v441 = vadd.f32 %v272, %v411
      %v442 = vadd.f32 %v273, %v414
      %v443 = vadd.f32 %v274, %v419
      %v444 = vadd.f32 %v275, %v422
      %v445 = vadd.f32 %v276, %v427
      %v446 = vadd.f32 %v277, %v430
      %v447 = vadd.f32 %v278, %v435
      %v448 = vadd.f32 %v279, %v438
      %449 = vst [vmem:[#allocation2] sm:$0xff] %v441
      %450 = vst [vmem:[#allocation2 + $0x8] sm:$0xff] %v442
      %451 = vst [vmem:[#allocation2 + $0x10] sm:$0xff] %v443
      %452 = vst [vmem:[#allocation2 + $0x18] sm:$0xff] %v444
      %453 = vst [vmem:[#allocation2 + $0x20] sm:$0xff] %v445
      %454 = vst [vmem:[#allocation2 + $0x28] sm:$0xff] %v446
      %455 = vst [vmem:[#allocation2 + $0x30] sm:$0xff] %v447
      %456 = vst [vmem:[#allocation2 + $0x38] sm:$0xff] %v448
      // Predicated region
      $region37: #{bottleneck_forward.4} parent=31 // pred_check
        %p457 = pneg %p260
      $region38: #{bottleneck_forward.4} parent=31 // pred_check_branch
        %459 = sbr.rel (%p457) target = $region40
      $region39: #{bottleneck_forward.4} parent=31 // pred_region
        %v460 = vld [vmem:[#allocation2] sm:$0xff]
        %v461 = vld [vmem:[#allocation2 + $0x8] sm:$0xff]
        %v462 = vld [vmem:[#allocation2 + $0x10] sm:$0xff]
        %v463 = vld [vmem:[#allocation2 + $0x18] sm:$0xff]
        %v464 = vld [vmem:[#allocation2 + $0x20] sm:$0xff]
        %v465 = vld [vmem:[#allocation2 + $0x28] sm:$0xff]
        %v466 = vld [vmem:[#allocation2 + $0x30] sm:$0xff]
        %v467 = vld [vmem:[#allocation2 + $0x38] sm:$0xff]
        %v468 = vld [vmem:[%s249] sm:$0x1]
        %v470 = vlaneseq
        %v471 = vshrl.u32 %v470, 7
        %v472 = vsub.s32 0, %v471
        %v473 = vrot.slane %v468, %v472
        %v475 = vadd.f32 %v460, %v473
        %v476 = vadd.f32 %v461, %v473
        %v477 = vadd.f32 %v462, %v473
        %v478 = vadd.f32 %v463, %v473
        %v479 = vadd.f32 %v464, %v473
        %v480 = vadd.f32 %v465, %v473
        %v481 = vadd.f32 %v466, %v473
        %v482 = vadd.f32 %v467, %v473
        %v483 = vmax.f32 %v475, 0.0
        %v484 = vmax.f32 %v476, 0.0
        %v485 = vmax.f32 %v477, 0.0
        %v486 = vmax.f32 %v478, 0.0
        %v487 = vmax.f32 %v479, 0.0
        %v488 = vmax.f32 %v480, 0.0
        %v489 = vmax.f32 %v481, 0.0
        %v490 = vmax.f32 %v482, 0.0
        %v491 = vpack.c.bf16 %v484, %v483
        %v492 = vpack.c.bf16 %v486, %v485
        %v493 = vpack.c.bf16 %v488, %v487
        %v494 = vpack.c.bf16 %v490, %v489
        %v499 = vunpack.c.l.b16 %v491
        %v500 = vunpack.c.h.b16 %v491
        %v501 = vunpack.c.l.b16 %v492
        %v502 = vunpack.c.h.b16 %v492
        %v503 = vunpack.c.l.b16 %v493
        %v504 = vunpack.c.h.b16 %v493
        %v505 = vunpack.c.l.b16 %v494
        %v506 = vunpack.c.h.b16 %v494
        %v507 = vpack.c.b16 %v499, %v499
        %v508 = vpack.c.b16 %v500, %v500
        %v509 = vpack.c.b16 %v501, %v501
        %v510 = vpack.c.b16 %v502, %v502
        %v511 = vpack.c.b16 %v503, %v503
        %v512 = vpack.c.b16 %v504, %v504
        %v513 = vpack.c.b16 %v505, %v505
        %v514 = vpack.c.b16 %v506, %v506
        %523 = vst [vmem:[%s257] sm:$0xf] %v507
        %524 = vst [vmem:[%s257 + $0x4] sm:$0xf] %v508
        %525 = vst [vmem:[%s257 + $0x8] sm:$0xf] %v509
        %526 = vst [vmem:[%s257 + $0xc] sm:$0xf] %v510
        %527 = vst [vmem:[%s257 + $0x10] sm:$0xf] %v511
        %528 = vst [vmem:[%s257 + $0x14] sm:$0xf] %v512
        %529 = vst [vmem:[%s257 + $0x18] sm:$0xf] %v513
        %530 = vst [vmem:[%s257 + $0x1c] sm:$0xf] %v514
      $region40: #{bottleneck_forward.4} parent=31 // pred_fallthru
        _
      %s531 = smul.u32 8, %s19
      %p532 = scmp.lt.s32.totalorder %s531, 15
      %s533 = scalar_select %p532, %s531, 15
      %p534 = scmp.lt.s32.totalorder %s20, 0
      %s535 = scalar_select %p534, %s20, 0
      %s536 = sadd.s32 %s535, %s533
      %s537 = smul.addr %s536, 4
      %s538 = scalar_lea.vmem %s3, %s537
      // Predicated region
      $region41: #{bottleneck_forward.4} parent=31 // pred_check
        %p539 = pneg %p135
      $region42: #{bottleneck_forward.4} parent=31 // pred_check_branch
        %541 = sbr.rel (%p539) target = $region44
      $region43: #{bottleneck_forward.4} parent=31 // pred_region
        %s542 = smul.u32 8, %s19
      $region44: #{bottleneck_forward.4} parent=31 // pred_fallthru
        _
    $region32: #{bottleneck_forward.4} parent=5 // pred_fallthru
      _
    %p543 = scmp.le.s32.totalorder 2, %s9
    // Predicated region
    $region45: #{bottleneck_forward.4} parent=5 // pred_check
      %p544 = pneg %p543
    $region46: #{bottleneck_forward.4} parent=5 // pred_check_branch
      %546 = sbr.rel (%p544) target = $region48
    $region47: #{bottleneck_forward.4} parent=5 // pred_region
      %s547 = ssub.s32 %s9, 2
      // Predicated region
      $region49: #{bottleneck_forward.4} parent=47 // pred_check
        %p548 = pneg %p141
      $region50: #{bottleneck_forward.4} parent=47 // pred_check_branch
        %550 = sbr.rel (%p548) target = $region52
      $region51: #{bottleneck_forward.4} parent=47 // pred_region
        %s551 = smul.u32 8, %s22
        %p552 = scmp.lt.s32.totalorder %s551, 15
        %s553 = scalar_select %p552, %s551, 15
        %p554 = scmp.lt.s32.totalorder %s23, 0
        %s555 = scalar_select %p554, %s23, 0
        %s556 = sadd.s32 %s555, %s553
        %s557 = smul.addr %s556, 4
        %s558 = scalar_lea.vmem %s3, %s557
      $region52: #{bottleneck_forward.4} parent=47 // pred_fallthru
        _
    $region48: #{bottleneck_forward.4} parent=5 // pred_fallthru
      _
  $region6: #{bottleneck_forward.4} parent=0 // loop_footer
    %s13 = sadd.s32 1, %s9
  $region7: #{bottleneck_forward.4} parent=0 // loop_footer_branch
    %8 = sbr.rel target = $region3
  $region8: #{bottleneck_forward.4} parent=0 // loop_exit
    _

// kernel: bottleneck_forward.3
$region0: #{bottleneck_forward.3}
  #allocation0 [shape = 'u32[]', space=smem, size = 0x4, offset = 0x4, fixed_abs, tag = 'smem constant byte address 0x4 - core index']
  #allocation1 [shape = 'u32[144,128]{1,0:T(1,128)}', space=vmem, size = 0x12000, scoped, tag = 'internal scratch']
  #allocation2 [shape = 'f32[256,128]{1,0:T(8,128)}', space=vmem, size = 0x20000, scoped, tag = 'scratch operand']
  %s0 = inlined_call_operand.vmem [shape: bf16[512,128], index: 0, kind: input, shape index: {}]
  %s1 = inlined_call_operand.vmem [shape: bf16[128,128], index: 1, kind: input, shape index: {}]
  %s2 = inlined_call_operand.vmem [shape: f32[1,128], index: 2, kind: input, shape index: {}]
  %s3 = inlined_call_operand.vmem [shape: bf16[512,128], index: 3, kind: output, shape index: {}]
  %s4 = sld [smem:[#allocation0]]
  $region53: #{bottleneck_forward.3} parent=0
    _
  %s6 = ssub.s32 1, %s4
  %s7 = scalar_select 0, %s6, %s4
  loop: start=0, step=1, limit=4
  $region2: #{bottleneck_forward.3} parent=0 // loop_pre_header
    _
  $region3: #{bottleneck_forward.3} parent=0 // loop_header
    %s9 = sphi 0, %s13
    %p10 = scmp.ge.s32.totalorder %s9, 4
    %s16 = sphi 0, %s35
    %s17 = sphi 0, %s31
    %s18 = sphi 0, %s27
    %s19 = sphi 0, %s16
    %s20 = sphi 0, %s17
    %s21 = sphi 0, %s18
    %s22 = sphi 0, %s19
    %s23 = sphi 0, %s20
    %s24 = sphi 0, %s21
    %s40 = sphi 0, %s42
    %s43 = sphi 0, %s40
    %s44 = sphi 0, %s43
    %s60 = sphi 0, %s44
    %s68 = sphi 0, %s70
    %s71 = sphi 0, %s68
    %s72 = sphi 0, %s71
    %s88 = sphi 0, %s72
    %s94 = sphi 0, %s96
    %s97 = sphi 0, %s94
    %s98 = sphi 0, %s97
    %s114 = sphi 0, %s98
    %s122 = sphi 0, %s124
    %s125 = sphi 0, %s122
    %s126 = sphi 0, %s125
    %s142 = sphi 0, %s126
  $region4: #{bottleneck_forward.3} parent=0 // loop_header_branch
    %12 = sbr.rel (%p10) target = $region8
  $region5: #{bottleneck_forward.3} parent=0 // loop_body
    %s14 = ssub.s32 %s9, 1
    %s15 = ssub.s32 %s9, 2
    %s25 = sadd.s32 1, %s18
    %p26 = scmp.ge.s32.totalorder %s25, 1
    %s27 = scalar_select %p26, 0, %s25
    %s28 = sadd.s32 1, %s17
    %s29 = scalar_select %p26, %s28, %s17
    %p30 = scmp.ge.s32.totalorder %s29, 1
    %s31 = scalar_select %p30, 0, %s29
    %s32 = sadd.s32 1, %s16
    %s33 = scalar_select %p30, %s32, %s16
    %p34 = scmp.ge.s32.totalorder %s33, 2
    %s35 = scalar_select %p34, 0, %s33
    %s36 = ssub.s32 %s16, %s35
    %s37 = ssub.s32 %s18, %s27
    %s38 = sor.u32 %s36, %s37
    %p39 = scmp.eq.s32.totalorder %s38, 0
    %s41 = sadd.s32 %s40, 1
    %s42 = scalar_select %p39, %s40, %s41
    %p45 = pneg %p39
    %p46 = scmp.eq.s32.totalorder %s9, 1
    %p47 = por %p45, %p46
    %p48 = scmp.ne.s32.totalorder %s40, %s43
    %p49 = scmp.eq.s32.totalorder %s9, 0
    %p50 = por %p48, %p49
    %p51 = scmp.ne.s32.totalorder %s40, %s43
    %p52 = scmp.eq.s32.totalorder %s14, 1
    %p53 = por %p51, %p52
    %p54 = scmp.ne.s32.totalorder %s43, %s44
    %p55 = scmp.eq.s32.totalorder %s14, 0
    %p56 = por %p54, %p55
    %p57 = scmp.ne.s32.totalorder %s43, %s44
    %p58 = scmp.eq.s32.totalorder %s15, 1
    %p59 = por %p57, %p58
    %p61 = scmp.ne.s32.totalorder %s44, %s60
    %p62 = scmp.eq.s32.totalorder %s15, 0
    %p63 = por %p61, %p62
    %s64 = ssub.s32 %s18, %s27
    %s65 = ssub.s32 %s17, %s31
    %s66 = sor.u32 %s64, %s65
    %p67 = scmp.eq.s32.totalorder %s66, 0
    %s69 = sadd.s32 %s68, 1
    %s70 = scalar_select %p67, %s68, %s69
    %p73 = pneg %p67
    %p74 = scmp.eq.s32.totalorder %s9, 1
    %p75 = por %p73, %p74
    %p76 = scmp.ne.s32.totalorder %s68, %s71
    %p77 = scmp.eq.s32.totalorder %s9, 0
    %p78 = por %p76, %p77
    %p79 = scmp.ne.s32.totalorder %s68, %s71
    %p80 = scmp.eq.s32.totalorder %s14, 1
    %p81 = por %p79, %p80
    %p82 = scmp.ne.s32.totalorder %s71, %s72
    %p83 = scmp.eq.s32.totalorder %s14, 0
    %p84 = por %p82, %p83
    %p85 = scmp.ne.s32.totalorder %s71, %s72
    %p86 = scmp.eq.s32.totalorder %s15, 1
    %p87 = por %p85, %p86
    %p89 = scmp.ne.s32.totalorder %s72, %s88
    %p90 = scmp.eq.s32.totalorder %s15, 0
    %p91 = por %p89, %p90
    %s92 = ssub.s32 %s17, %s31
    %p93 = scmp.eq.s32.totalorder %s92, 0
    %s95 = sadd.s32 %s94, 1
    %s96 = scalar_select %p93, %s94, %s95
    %p99 = pneg %p93
    %p100 = scmp.eq.s32.totalorder %s9, 1
    %p101 = por %p99, %p100
    %p102 = scmp.ne.s32.totalorder %s94, %s97
    %p103 = scmp.eq.s32.totalorder %s9, 0
    %p104 = por %p102, %p103
    %p105 = scmp.ne.s32.totalorder %s94, %s97
    %p106 = scmp.eq.s32.totalorder %s14, 1
    %p107 = por %p105, %p106
    %p108 = scmp.ne.s32.totalorder %s97, %s98
    %p109 = scmp.eq.s32.totalorder %s14, 0
    %p110 = por %p108, %p109
    %p111 = scmp.ne.s32.totalorder %s97, %s98
    %p112 = scmp.eq.s32.totalorder %s15, 1
    %p113 = por %p111, %p112
    %p115 = scmp.ne.s32.totalorder %s98, %s114
    %p116 = scmp.eq.s32.totalorder %s15, 0
    %p117 = por %p115, %p116
    %s118 = ssub.s32 %s16, %s35
    %s119 = ssub.s32 %s17, %s31
    %s120 = sor.u32 %s118, %s119
    %p121 = scmp.eq.s32.totalorder %s120, 0
    %s123 = sadd.s32 %s122, 1
    %s124 = scalar_select %p121, %s122, %s123
    %p127 = pneg %p121
    %p128 = scmp.eq.s32.totalorder %s9, 1
    %p129 = por %p127, %p128
    %p130 = scmp.ne.s32.totalorder %s122, %s125
    %p131 = scmp.eq.s32.totalorder %s9, 0
    %p132 = por %p130, %p131
    %p133 = scmp.ne.s32.totalorder %s122, %s125
    %p134 = scmp.eq.s32.totalorder %s14, 1
    %p135 = por %p133, %p134
    %p136 = scmp.ne.s32.totalorder %s125, %s126
    %p137 = scmp.eq.s32.totalorder %s14, 0
    %p138 = por %p136, %p137
    %p139 = scmp.ne.s32.totalorder %s125, %s126
    %p140 = scmp.eq.s32.totalorder %s15, 1
    %p141 = por %p139, %p140
    %p143 = scmp.ne.s32.totalorder %s126, %s142
    %p144 = scmp.eq.s32.totalorder %s15, 0
    %p145 = por %p143, %p144
    %p146 = scmp.le.s32.totalorder 1, %s9
    %p147 = scmp.lt.s32.totalorder %s9, 3
    %p148 = pnand %p146, %p147
    %p149 = pneg %p148
    // Predicated region
    $region9: #{bottleneck_forward.3} parent=5 // pred_check
      _
    $region10: #{bottleneck_forward.3} parent=5 // pred_check_branch
      %151 = sbr.rel (%p148) target = $region12
    $region11: #{bottleneck_forward.3} parent=5 // pred_region
      %s152 = ssub.s32 %s9, 1
      // Predicated region
      $region13: #{bottleneck_forward.3} parent=11 // pred_check
        %p153 = pneg %p84
      $region14: #{bottleneck_forward.3} parent=11 // pred_check_branch
        %155 = sbr.rel (%p153) target = $region16
      $region15: #{bottleneck_forward.3} parent=11 // pred_region
        %s156 = smul.u32 16, %s21
        %p157 = scmp.lt.s32.totalorder %s156, 15
        %s158 = scalar_select %p157, %s156, 15
        %p159 = scmp.lt.s32.totalorder %s20, 0
        %s160 = scalar_select %p159, %s20, 0
        %s161 = sadd.s32 %s160, %s158
        %s162 = smul.addr %s161, 4
        %s163 = scalar_lea.vmem %s1, %s162
        %s164 = smul.u32 16, %s21
      $region16: #{bottleneck_forward.3} parent=11 // pred_fallthru
        _
      // Predicated region
      $region17: #{bottleneck_forward.3} parent=11 // pred_check
        %p165 = pneg %p110
      $region18: #{bottleneck_forward.3} parent=11 // pred_check_branch
        %167 = sbr.rel (%p165) target = $region20
      $region19: #{bottleneck_forward.3} parent=11 // pred_region
        %p168 = scmp.lt.s32.totalorder %s20, 0
        %s169 = scalar_select %p168, %s20, 0
        %s170 = scalar_lea.vmem %s2, %s169
      $region20: #{bottleneck_forward.3} parent=11 // pred_fallthru
        _
    $region12: #{bottleneck_forward.3} parent=5 // pred_fallthru
      _
    %p171 = scmp.lt.s32.totalorder %s9, 2
    // Predicated region
    $region21: #{bottleneck_forward.3} parent=5 // pred_check
      %p172 = pneg %p171
    $region22: #{bottleneck_forward.3} parent=5 // pred_check_branch
      %174 = sbr.rel (%p172) target = $region24
    $region23: #{bottleneck_forward.3} parent=5 // pred_region
      // Predicated region
      $region25: #{bottleneck_forward.3} parent=23 // pred_check
        %p175 = pneg %p50
      $region26: #{bottleneck_forward.3} parent=23 // pred_check_branch
        %177 = sbr.rel (%p175) target = $region28
      $region27: #{bottleneck_forward.3} parent=23 // pred_region
        %s178 = smul.u32 32, %s16
        %p179 = scmp.lt.s32.totalorder %s178, 63
        %s180 = scalar_select %p179, %s178, 63
        %p181 = scmp.lt.s32.totalorder %s18, 0
        %s182 = scalar_select %p181, %s18, 0
        %s183 = sadd.s32 %s182, %s180
        %s184 = smul.addr %s183, 4
        %s185 = scalar_lea.vmem %s0, %s184
        %s186 = smul.u32 32, %s16
      $region28: #{bottleneck_forward.3} parent=23 // pred_fallthru
        _
    $region24: #{bottleneck_forward.3} parent=5 // pred_fallthru
      _
    %p187 = scmp.le.s32.totalorder 1, %s9
    %p188 = scmp.lt.s32.totalorder %s9, 3
    %p189 = pnand %p187, %p188
    %p190 = pneg %p189
    // Predicated region
    $region29: #{bottleneck_forward.3} parent=5 // pred_check
      _
    $region30: #{bottleneck_forward.3} parent=5 // pred_check_branch
      %192 = sbr.rel (%p189) target = $region32
    $region31: #{bottleneck_forward.3} parent=5 // pred_region
      %s193 = ssub.s32 %s9, 1
      %s194 = smul.u32 32, %s19
      %p195 = scmp.lt.s32.totalorder %s194, 63
      %s196 = scalar_select %p195, %s194, 63
      %p197 = scmp.lt.s32.totalorder %s21, 0
      %s198 = scalar_select %p197, %s21, 0
      %s199 = sadd.s32 %s198, %s196
      %s200 = smul.addr %s199, 4
      %s201 = scalar_lea.vmem %s0, %s200
      %p202 = pneg %p56
      %p203 = pneg %p53
      %s204 = smul.u32 16, %s21
      %p205 = scmp.lt.s32.totalorder %s204, 15
      %s206 = scalar_select %p205, %s204, 15
      %p207 = scmp.lt.s32.totalorder %s20, 0
      %s208 = scalar_select %p207, %s20, 0
      %s209 = sadd.s32 %s208, %s206
      %s210 = smul.addr %s209, 4
      %s211 = scalar_lea.vmem %s1, %s210
      %p212 = pneg %p84
      %p213 = pneg %p81
      %p214 = scmp.lt.s32.totalorder %s20, 0
      %s215 = scalar_select %p214, %s20, 0
      %s216 = scalar_lea.vmem %s2, %s215
      %p217 = pneg %p110
      %p218 = pneg %p107
      %p219 = pneg %p138
      %p220 = pneg %p135
      %s221 = smul.u32 32, %s19
      %p222 = scmp.lt.s32.totalorder %s221, 63
      %s223 = scalar_select %p222, %s221, 63
      %p224 = scmp.lt.s32.totalorder %s20, 0
      %s225 = scalar_select %p224, %s20, 0
      %s226 = sadd.s32 %s225, %s223
      %s227 = smul.addr %s226, 4
      %s228 = scalar_lea.vmem %s3, %s227
      %s229 = smul.u32 32, %s19
      %p230 = scmp.lt.s32.totalorder %s229, 63
      %s231 = scalar_select %p230, %s229, 63
      %p232 = scmp.lt.s32.totalorder %s21, 0
      %s233 = scalar_select %p232, %s21, 0
      %s234 = sadd.s32 %s233, %s231
      %s235 = smul.addr %s234, 4
      %s236 = scalar_lea.vmem %s0, %s235
      %s237 = smul.u32 32, %s19
      %s238 = smul.u32 16, %s21
      %p239 = scmp.lt.s32.totalorder %s238, 15
      %s240 = scalar_select %p239, %s238, 15
      %p241 = scmp.lt.s32.totalorder %s20, 0
      %s242 = scalar_select %p241, %s20, 0
      %s243 = sadd.s32 %s242, %s240
      %s244 = smul.addr %s243, 4
      %s245 = scalar_lea.vmem %s1, %s244
      %s246 = smul.u32 16, %s21
      %p247 = scmp.lt.s32.totalorder %s20, 0
      %s248 = scalar_select %p247, %s20, 0
      %s249 = scalar_lea.vmem %s2, %s248
      %s250 = smul.u32 32, %s19
      %p251 = scmp.lt.s32.totalorder %s250, 63
      %s252 = scalar_select %p251, %s250, 63
      %p253 = scmp.lt.s32.totalorder %s20, 0
      %s254 = scalar_select %p253, %s20, 0
      %s255 = sadd.s32 %s254, %s252
      %s256 = smul.addr %s255, 4
      %s257 = scalar_lea.vmem %s3, %s256
      %s258 = smul.u32 32, %s19
      %p260 = scmp.eq.s32.totalorder %s21, 0
      // Predicated region
      $region33: #{bottleneck_forward.3} parent=31 // pred_check
        %p261 = pneg %p260
      $region34: #{bottleneck_forward.3} parent=31 // pred_check_branch
        %263 = sbr.rel (%p261) target = $region36
      $region35: #{bottleneck_forward.3} parent=31 // pred_region
        %264 = vst [vmem:[#allocation2] sm:$0xff] 0.0
        %265 = vst [vmem:[#allocation2 + $0x8] sm:$0xff] 0.0
        %266 = vst [vmem:[#allocation2 + $0x10] sm:$0xff] 0.0
        %267 = vst [vmem:[#allocation2 + $0x18] sm:$0xff] 0.0
        %268 = vst [vmem:[#allocation2 + $0x20] sm:$0xff] 0.0
        %269 = vst [vmem:[#allocation2 + $0x28] sm:$0xff] 0.0
        %270 = vst [vmem:[#allocation2 + $0x30] sm:$0xff] 0.0
        %271 = vst [vmem:[#allocation2 + $0x38] sm:$0xff] 0.0
        %272 = vst [vmem:[#allocation2 + $0x40] sm:$0xff] 0.0
        %273 = vst [vmem:[#allocation2 + $0x48] sm:$0xff] 0.0
        %274 = vst [vmem:[#allocation2 + $0x50] sm:$0xff] 0.0
        %275 = vst [vmem:[#allocation2 + $0x58] sm:$0xff] 0.0
        %276 = vst [vmem:[#allocation2 + $0x60] sm:$0xff] 0.0
        %277 = vst [vmem:[#allocation2 + $0x68] sm:$0xff] 0.0
        %278 = vst [vmem:[#allocation2 + $0x70] sm:$0xff] 0.0
        %279 = vst [vmem:[#allocation2 + $0x78] sm:$0xff] 0.0
        %280 = vst [vmem:[#allocation2 + $0x80] sm:$0xff] 0.0
        %281 = vst [vmem:[#allocation2 + $0x88] sm:$0xff] 0.0
        %282 = vst [vmem:[#allocation2 + $0x90] sm:$0xff] 0.0
        %283 = vst [vmem:[#allocation2 + $0x98] sm:$0xff] 0.0
        %284 = vst [vmem:[#allocation2 + $0xa0] sm:$0xff] 0.0
        %285 = vst [vmem:[#allocation2 + $0xa8] sm:$0xff] 0.0
        %286 = vst [vmem:[#allocation2 + $0xb0] sm:$0xff] 0.0
        %287 = vst [vmem:[#allocation2 + $0xb8] sm:$0xff] 0.0
        %288 = vst [vmem:[#allocation2 + $0xc0] sm:$0xff] 0.0
        %289 = vst [vmem:[#allocation2 + $0xc8] sm:$0xff] 0.0
        %290 = vst [vmem:[#allocation2 + $0xd0] sm:$0xff] 0.0
        %291 = vst [vmem:[#allocation2 + $0xd8] sm:$0xff] 0.0
        %292 = vst [vmem:[#allocation2 + $0xe0] sm:$0xff] 0.0
        %293 = vst [vmem:[#allocation2 + $0xe8] sm:$0xff] 0.0
        %294 = vst [vmem:[#allocation2 + $0xf0] sm:$0xff] 0.0
        %295 = vst [vmem:[#allocation2 + $0xf8] sm:$0xff] 0.0
      $region36: #{bottleneck_forward.3} parent=31 // pred_fallthru
        _
      %v296 = vld [vmem:[#allocation2] sm:$0xff]
      %v297 = vld [vmem:[#allocation2 + $0x8] sm:$0xff]
      %v298 = vld [vmem:[#allocation2 + $0x10] sm:$0xff]
      %v299 = vld [vmem:[#allocation2 + $0x18] sm:$0xff]
      %v300 = vld [vmem:[#allocation2 + $0x20] sm:$0xff]
      %v301 = vld [vmem:[#allocation2 + $0x28] sm:$0xff]
      %v302 = vld [vmem:[#allocation2 + $0x30] sm:$0xff]
      %v303 = vld [vmem:[#allocation2 + $0x38] sm:$0xff]
      %v304 = vld [vmem:[#allocation2 + $0x40] sm:$0xff]
      %v305 = vld [vmem:[#allocation2 + $0x48] sm:$0xff]
      %v306 = vld [vmem:[#allocation2 + $0x50] sm:$0xff]
      %v307 = vld [vmem:[#allocation2 + $0x58] sm:$0xff]
      %v308 = vld [vmem:[#allocation2 + $0x60] sm:$0xff]
      %v309 = vld [vmem:[#allocation2 + $0x68] sm:$0xff]
      %v310 = vld [vmem:[#allocation2 + $0x70] sm:$0xff]
      %v311 = vld [vmem:[#allocation2 + $0x78] sm:$0xff]
      %v312 = vld [vmem:[#allocation2 + $0x80] sm:$0xff]
      %v313 = vld [vmem:[#allocation2 + $0x88] sm:$0xff]
      %v314 = vld [vmem:[#allocation2 + $0x90] sm:$0xff]
      %v315 = vld [vmem:[#allocation2 + $0x98] sm:$0xff]
      %v316 = vld [vmem:[#allocation2 + $0xa0] sm:$0xff]
      %v317 = vld [vmem:[#allocation2 + $0xa8] sm:$0xff]
      %v318 = vld [vmem:[#allocation2 + $0xb0] sm:$0xff]
      %v319 = vld [vmem:[#allocation2 + $0xb8] sm:$0xff]
      %v320 = vld [vmem:[#allocation2 + $0xc0] sm:$0xff]
      %v321 = vld [vmem:[#allocation2 + $0xc8] sm:$0xff]
      %v322 = vld [vmem:[#allocation2 + $0xd0] sm:$0xff]
      %v323 = vld [vmem:[#allocation2 + $0xd8] sm:$0xff]
      %v324 = vld [vmem:[#allocation2 + $0xe0] sm:$0xff]
      %v325 = vld [vmem:[#allocation2 + $0xe8] sm:$0xff]
      %v326 = vld [vmem:[#allocation2 + $0xf0] sm:$0xff]
      %v327 = vld [vmem:[#allocation2 + $0xf8] sm:$0xff]
      %v328 = vld [vmem:[%s236] sm:$0xf]
      %v329 = vld [vmem:[%s236 + $0x4] sm:$0xf]
      %v330 = vld [vmem:[%s236 + $0x8] sm:$0xf]
      %v331 = vld [vmem:[%s236 + $0xc] sm:$0xf]
      %v332 = vld [vmem:[%s236 + $0x10] sm:$0xf]
      %v333 = vld [vmem:[%s236 + $0x14] sm:$0xf]
      %v334 = vld [vmem:[%s236 + $0x18] sm:$0xf]
      %v335 = vld [vmem:[%s236 + $0x1c] sm:$0xf]
      %v336 = vld [vmem:[%s236 + $0x20] sm:$0xf]
      %v337 = vld [vmem:[%s236 + $0x24] sm:$0xf]
      %v338 = vld [vmem:[%s236 + $0x28] sm:$0xf]
      %v339 = vld [vmem:[%s236 + $0x2c] sm:$0xf]
      %v340 = vld [vmem:[%s236 + $0x30] sm:$0xf]
      %v341 = vld [vmem:[%s236 + $0x34] sm:$0xf]
      %v342 = vld [vmem:[%s236 + $0x38] sm:$0xf]
      %v343 = vld [vmem:[%s236 + $0x3c] sm:$0xf]
      %v344 = vld [vmem:[%s236 + $0x40] sm:$0xf]
      %v345 = vld [vmem:[%s236 + $0x44] sm:$0xf]
      %v346 = vld [vmem:[%s236 + $0x48] sm:$0xf]
      %v347 = vld [vmem:[%s236 + $0x4c] sm:$0xf]
      %v348 = vld [vmem:[%s236 + $0x50] sm:$0xf]
      %v349 = vld [vmem:[%s236 + $0x54] sm:$0xf]
      %v350 = vld [vmem:[%s236 + $0x58] sm:$0xf]
      %v351 = vld [vmem:[%s236 + $0x5c] sm:$0xf]
      %v352 = vld [vmem:[%s236 + $0x60] sm:$0xf]
      %v353 = vld [vmem:[%s236 + $0x64] sm:$0xf]
      %v354 = vld [vmem:[%s236 + $0x68] sm:$0xf]
      %v355 = vld [vmem:[%s236 + $0x6c] sm:$0xf]
      %v356 = vld [vmem:[%s236 + $0x70] sm:$0xf]
      %v357 = vld [vmem:[%s236 + $0x74] sm:$0xf]
      %v358 = vld [vmem:[%s236 + $0x78] sm:$0xf]
      %v359 = vld [vmem:[%s236 + $0x7c] sm:$0xf]
      %v360 = vld [vmem:[%s245] sm:$0xf]
      %v361 = vld [vmem:[%s245 + $0x4] sm:$0xf]
      %v362 = vld [vmem:[%s245 + $0x8] sm:$0xf]
      %v363 = vld [vmem:[%s245 + $0xc] sm:$0xf]
      %v364 = vld [vmem:[%s245 + $0x10] sm:$0xf]
      %v365 = vld [vmem:[%s245 + $0x14] sm:$0xf]
      %v366 = vld [vmem:[%s245 + $0x18] sm:$0xf]
      %v367 = vld [vmem:[%s245 + $0x1c] sm:$0xf]
      %v368 = vld [vmem:[%s245 + $0x20] sm:$0xf]
      %v369 = vld [vmem:[%s245 + $0x24] sm:$0xf]
      %v370 = vld [vmem:[%s245 + $0x28] sm:$0xf]
      %v371 = vld [vmem:[%s245 + $0x2c] sm:$0xf]
      %v372 = vld [vmem:[%s245 + $0x30] sm:$0xf]
      %v373 = vld [vmem:[%s245 + $0x34] sm:$0xf]
      %v374 = vld [vmem:[%s245 + $0x38] sm:$0xf]
      %v375 = vld [vmem:[%s245 + $0x3c] sm:$0xf]
      %v408 = vunpack.c.l.b16 %v328
      %v409 = vunpack.c.l.b16 %v329
      %v410 = vunpack.c.l.b16 %v330
      %v411 = vunpack.c.l.b16 %v331
      %v412 = vunpack.c.l.b16 %v332
      %v413 = vunpack.c.l.b16 %v333
      %v414 = vunpack.c.l.b16 %v334
      %v415 = vunpack.c.l.b16 %v335
      %v416 = vunpack.c.l.b16 %v336
      %v417 = vunpack.c.l.b16 %v337
      %v418 = vunpack.c.l.b16 %v338
      %v419 = vunpack.c.l.b16 %v339
      %v420 = vunpack.c.l.b16 %v340
      %v421 = vunpack.c.l.b16 %v341
      %v422 = vunpack.c.l.b16 %v342
      %v423 = vunpack.c.l.b16 %v343
      %v424 = vunpack.c.l.b16 %v344
      %v425 = vunpack.c.l.b16 %v345
      %v426 = vunpack.c.l.b16 %v346
      %v427 = vunpack.c.l.b16 %v347
      %v428 = vunpack.c.l.b16 %v348
      %v429 = vunpack.c.l.b16 %v349
      %v430 = vunpack.c.l.b16 %v350
      %v431 = vunpack.c.l.b16 %v351
      %v432 = vunpack.c.l.b16 %v352
      %v433 = vunpack.c.l.b16 %v353
      %v434 = vunpack.c.l.b16 %v354
      %v435 = vunpack.c.l.b16 %v355
      %v436 = vunpack.c.l.b16 %v356
      %v437 = vunpack.c.l.b16 %v357
      %v438 = vunpack.c.l.b16 %v358
      %v439 = vunpack.c.l.b16 %v359
      %v440 = vpack.c.b16 %v409, %v408
      %v441 = vpack.c.b16 %v411, %v410
      %v442 = vpack.c.b16 %v413, %v412
      %v443 = vpack.c.b16 %v415, %v414
      %v444 = vpack.c.b16 %v417, %v416
      %v445 = vpack.c.b16 %v419, %v418
      %v446 = vpack.c.b16 %v421, %v420
      %v447 = vpack.c.b16 %v423, %v422
      %v448 = vpack.c.b16 %v425, %v424
      %v449 = vpack.c.b16 %v427, %v426
      %v450 = vpack.c.b16 %v429, %v428
      %v451 = vpack.c.b16 %v431, %v430
      %v452 = vpack.c.b16 %v433, %v432
      %v453 = vpack.c.b16 %v435, %v434
      %v454 = vpack.c.b16 %v437, %v436
      %v455 = vpack.c.b16 %v439, %v438
      %v488 = vunpack.c.l.b16 %v360
      %v489 = vunpack.c.l.b16 %v361
      %v490 = vunpack.c.l.b16 %v362
      %v491 = vunpack.c.l.b16 %v363
      %v492 = vunpack.c.l.b16 %v364
      %v493 = vunpack.c.l.b16 %v365
      %v494 = vunpack.c.l.b16 %v366
      %v495 = vunpack.c.l.b16 %v367
      %v496 = vunpack.c.l.b16 %v368
      %v497 = vunpack.c.l.b16 %v369
      %v498 = vunpack.c.l.b16 %v370
      %v499 = vunpack.c.l.b16 %v371
      %v500 = vunpack.c.l.b16 %v372
      %v501 = vunpack.c.l.b16 %v373
      %v502 = vunpack.c.l.b16 %v374
      %v503 = vunpack.c.l.b16 %v375
      %v504 = vpack.c.b16 %v489, %v488
      %v505 = vpack.c.b16 %v491, %v490
      %v506 = vpack.c.b16 %v493, %v492
      %v507 = vpack.c.b16 %v495, %v494
      %v508 = vpack.c.b16 %v497, %v496
      %v509 = vpack.c.b16 %v499, %v498
      %v510 = vpack.c.b16 %v501, %v500
      %v511 = vpack.c.b16 %v503, %v502
      %520 = vmatprep.subr.bf16.mxu0 0
      %521 = vmatpush1.bf16.msra.mxu0 %v504
      %522 = vmatprep.subr.bf16.mxu0 0
      %523 = vmatpush1.bf16.msra.mxu0 %v505
      %524 = vmatprep.subr.bf16.mxu0 0
      %525 = vmatpush1.bf16.msra.mxu0 %v506
      %526 = vmatprep.subr.bf16.mxu0 0
      %527 = vmatpush1.bf16.msra.mxu0 %v507
      %528 = vmatprep.subr.bf16.mxu0 0
      %529 = vmatpush1.bf16.msra.mxu0 %v508
      %530 = vmatprep.subr.bf16.mxu0 0
      %531 = vmatpush1.bf16.msra.mxu0 %v509
      %532 = vmatprep.subr.bf16.mxu0 0
      %533 = vmatpush1.bf16.msra.mxu0 %v510
      %534 = vmatprep.subr.bf16.mxu0 0
      %535 = vmatpush1.bf16.msra.mxu0 %v511
      %536 = vmatprep.subr.bf16.mxu0 0
      %537 = vmatpush1.bf16.msra.mxu0 0
      %538 = vmatprep.subr.bf16.mxu0 0
      %539 = vmatpush1.bf16.msra.mxu0 0
      %540 = vmatprep.subr.bf16.mxu0 0
      %541 = vmatpush1.bf16.msra.mxu0 0
      %542 = vmatprep.subr.bf16.mxu0 0
      %543 = vmatpush1.bf16.msra.mxu0 0
      %544 = vmatprep.subr.bf16.mxu0 0
      %545 = vmatpush1.bf16.msra.mxu0 0
      %546 = vmatprep.subr.bf16.mxu0 0
      %547 = vmatpush1.bf16.msra.mxu0 0
      %548 = vmatprep.subr.bf16.mxu0 0
      %549 = vmatpush1.bf16.msra.mxu0 0
      %550 = vmatprep.subr.bf16.mxu0 0
      %551 = vmatpush1.bf16.msra.mxu0 0
      %552 = vmatprep.mubr.bf16.mxu0 0
      %553 = vmatmul.mubr.bf16.gmra.mrb[0].mxu0 %v440
      %v554 = vpop.f32.mrb[0].mxu0
      %v555 = vadd.f32 0.0, %v554
      %v556 = vpop.f32.mrb[0].mxu0
      %v557 = vpop.f32.mrb[0].mxu0
      %v558 = vadd.f32 0.0, %v557
      %v559 = vpop.f32.mrb[0].mxu0
      %560 = vmatprep.mubr.bf16.mxu0 0
      %561 = vmatmul.mubr.bf16.gmra.mrb[0].mxu0 %v441
      %v562 = vpop.f32.mrb[0].mxu0
      %v563 = vadd.f32 0.0, %v562
      %v564 = vpop.f32.mrb[0].mxu0
      %v565 = vpop.f32.mrb[0].mxu0
      %v566 = vadd.f32 0.0, %v565
      %v567 = vpop.f32.mrb[0].mxu0
      %568 = vmatprep.mubr.bf16.mxu0 0
      %569 = vmatmul.mubr.bf16.gmra.mrb[0].mxu0 %v442
      %v570 = vpop.f32.mrb[0].mxu0
      %v571 = vadd.f32 0.0, %v570
      %v572 = vpop.f32.mrb[0].mxu0
      %v573 = vpop.f32.mrb[0].mxu0
      %v574 = vadd.f32 0.0, %v573
      %v575 = vpop.f32.mrb[0].mxu0
      %576 = vmatprep.mubr.bf16.mxu0 0
      %577 = vmatmul.mubr.bf16.gmra.mrb[0].mxu0 %v443
      %v578 = vpop.f32.mrb[0].mxu0
      %v579 = vadd.f32 0.0, %v578
      %v580 = vpop.f32.mrb[0].mxu0
      %v581 = vpop.f32.mrb[0].mxu0
      %v582 = vadd.f32 0.0, %v581
      %v583 = vpop.f32.mrb[0].mxu0
      %584 = vmatprep.mubr.bf16.mxu0 0
      %585 = vmatmul.mubr.bf16.gmra.mrb[0].mxu0 %v444
      %v586 = vpop.f32.mrb[0].mxu0
      %v587 = vadd.f32 0.0, %v586
      %v588 = vpop.f32.mrb[0].mxu0
      %v589 = vpop.f32.mrb[0].mxu0
      %v590 = vadd.f32 0.0, %v589
      %v591 = vpop.f32.mrb[0].mxu0
      %592 = vmatprep.mubr.bf16.mxu0 0
      %593 = vmatmul.mubr.bf16.gmra.mrb[0].mxu0 %v445
      %v594 = vpop.f32.mrb[0].mxu0
      %v595 = vadd.f32 0.0, %v594
      %v596 = vpop.f32.mrb[0].mxu0
      %v597 = vpop.f32.mrb[0].mxu0
      %v598 = vadd.f32 0.0, %v597
      %v599 = vpop.f32.mrb[0].mxu0
      %600 = vmatprep.mubr.bf16.mxu0 0
      %601 = vmatmul.mubr.bf16.gmra.mrb[0].mxu0 %v446
      %v602 = vpop.f32.mrb[0].mxu0
      %v603 = vadd.f32 0.0, %v602
      %v604 = vpop.f32.mrb[0].mxu0
      %v605 = vpop.f32.mrb[0].mxu0
      %v606 = vadd.f32 0.0, %v605
      %v607 = vpop.f32.mrb[0].mxu0
      %608 = vmatprep.mubr.bf16.mxu0 0
      %609 = vmatmul.mubr.bf16.gmra.mrb[0].mxu0 %v447
      %v610 = vpop.f32.mrb[0].mxu0
      %v611 = vadd.f32 0.0, %v610
      %v612 = vpop.f32.mrb[0].mxu0
      %v613 = vpop.f32.mrb[0].mxu0
      %v614 = vadd.f32 0.0, %v613
      %v615 = vpop.f32.mrb[0].mxu0
      %616 = vmatprep.mubr.bf16.mxu0 0
      %617 = vmatmul.mubr.bf16.gmra.mrb[0].mxu0 %v448
      %v618 = vpop.f32.mrb[0].mxu0
      %v619 = vadd.f32 0.0, %v618
      %v620 = vpop.f32.mrb[0].mxu0
      %v621 = vpop.f32.mrb[0].mxu0
      %v622 = vadd.f32 0.0, %v621
      %v623 = vpop.f32.mrb[0].mxu0
      %624 = vmatprep.mubr.bf16.mxu0 0
      %625 = vmatmul.mubr.bf16.gmra.mrb[0].mxu0 %v449
      %v626 = vpop.f32.mrb[0].mxu0
      %v627 = vadd.f32 0.0, %v626
      %v628 = vpop.f32.mrb[0].mxu0
      %v629 = vpop.f32.mrb[0].mxu0
      %v630 = vadd.f32 0.0, %v629
      %v631 = vpop.f32.mrb[0].mxu0
      %632 = vmatprep.mubr.bf16.mxu0 0
      %633 = vmatmul.mubr.bf16.gmra.mrb[0].mxu0 %v450
      %v634 = vpop.f32.mrb[0].mxu0
      %v635 = vadd.f32 0.0, %v634
      %v636 = vpop.f32.mrb[0].mxu0
      %v637 = vpop.f32.mrb[0].mxu0
      %v638 = vadd.f32 0.0, %v637
      %v639 = vpop.f32.mrb[0].mxu0
      %640 = vmatprep.mubr.bf16.mxu0 0
      %641 = vmatmul.mubr.bf16.gmra.mrb[0].mxu0 %v451
      %v642 = vpop.f32.mrb[0].mxu0
      %v643 = vadd.f32 0.0, %v642
      %v644 = vpop.f32.mrb[0].mxu0
      %v645 = vpop.f32.mrb[0].mxu0
      %v646 = vadd.f32 0.0, %v645
      %v647 = vpop.f32.mrb[0].mxu0
      %648 = vmatprep.mubr.bf16.mxu0 0
      %649 = vmatmul.mubr.bf16.gmra.mrb[0].mxu0 %v452
      %v650 = vpop.f32.mrb[0].mxu0
      %v651 = vadd.f32 0.0, %v650
      %v652 = vpop.f32.mrb[0].mxu0
      %v653 = vpop.f32.mrb[0].mxu0
      %v654 = vadd.f32 0.0, %v653
      %v655 = vpop.f32.mrb[0].mxu0
      %656 = vmatprep.mubr.bf16.mxu0 0
      %657 = vmatmul.mubr.bf16.gmra.mrb[0].mxu0 %v453
      %v658 = vpop.f32.mrb[0].mxu0
      %v659 = vadd.f32 0.0, %v658
      %v660 = vpop.f32.mrb[0].mxu0
      %v661 = vpop.f32.mrb[0].mxu0
      %v662 = vadd.f32 0.0, %v661
      %v663 = vpop.f32.mrb[0].mxu0
      %664 = vmatprep.mubr.bf16.mxu0 0
      %665 = vmatmul.mubr.bf16.gmra.mrb[0].mxu0 %v454
      %v666 = vpop.f32.mrb[0].mxu0
      %v667 = vadd.f32 0.0, %v666
      %v668 = vpop.f32.mrb[0].mxu0
      %v669 = vpop.f32.mrb[0].mxu0
      %v670 = vadd.f32 0.0, %v669
      %v671 = vpop.f32.mrb[0].mxu0
      %672 = vmatprep.mubr.bf16.mxu0 0
      %673 = vmatmul.mubr.bf16.gmra.mrb[0].mxu0 %v455
      %v674 = vpop.f32.mrb[0].mxu0
      %v675 = vadd.f32 0.0, %v674
      %v676 = vpop.f32.mrb[0].mxu0
      %v677 = vpop.f32.mrb[0].mxu0
      %v678 = vadd.f32 0.0, %v677
      %v679 = vpop.f32.mrb[0].mxu0
      %680 = vdwg.mxu0
      %v681 = vadd.f32 %v296, %v555
      %v682 = vadd.f32 %v297, %v558
      %v683 = vadd.f32 %v298, %v563
      %v684 = vadd.f32 %v299, %v566
      %v685 = vadd.f32 %v300, %v571
      %v686 = vadd.f32 %v301, %v574
      %v687 = vadd.f32 %v302, %v579
      %v688 = vadd.f32 %v303, %v582
      %v689 = vadd.f32 %v304, %v587
      %v690 = vadd.f32 %v305, %v590
      %v691 = vadd.f32 %v306, %v595
      %v692 = vadd.f32 %v307, %v598
      %v693 = vadd.f32 %v308, %v603
      %v694 = vadd.f32 %v309, %v606
      %v695 = vadd.f32 %v310, %v611
      %v696 = vadd.f32 %v311, %v614
      %v697 = vadd.f32 %v312, %v619
      %v698 = vadd.f32 %v313, %v622
      %v699 = vadd.f32 %v314, %v627
      %v700 = vadd.f32 %v315, %v630
      %v701 = vadd.f32 %v316, %v635
      %v702 = vadd.f32 %v317, %v638
      %v703 = vadd.f32 %v318, %v643
      %v704 = vadd.f32 %v319, %v646
      %v705 = vadd.f32 %v320, %v651
      %v706 = vadd.f32 %v321, %v654
      %v707 = vadd.f32 %v322, %v659
      %v708 = vadd.f32 %v323, %v662
      %v709 = vadd.f32 %v324, %v667
      %v710 = vadd.f32 %v325, %v670
      %v711 = vadd.f32 %v326, %v675
      %v712 = vadd.f32 %v327, %v678
      %713 = vst [vmem:[#allocation2] sm:$0xff] %v681
      %714 = vst [vmem:[#allocation2 + $0x8] sm:$0xff] %v682
      %715 = vst [vmem:[#allocation2 + $0x10] sm:$0xff] %v683
      %716 = vst [vmem:[#allocation2 + $0x18] sm:$0xff] %v684
      %717 = vst [vmem:[#allocation2 + $0x20] sm:$0xff] %v685
      %718 = vst [vmem:[#allocation2 + $0x28] sm:$0xff] %v686
      %719 = vst [vmem:[#allocation2 + $0x30] sm:$0xff] %v687
      %720 = vst [vmem:[#allocation2 + $0x38] sm:$0xff] %v688
      %721 = vst [vmem:[#allocation2 + $0x40] sm:$0xff] %v689
      %722 = vst [vmem:[#allocation2 + $0x48] sm:$0xff] %v690
      %723 = vst [vmem:[#allocation2 + $0x50] sm:$0xff] %v691
      %724 = vst [vmem:[#allocation2 + $0x58] sm:$0xff] %v692
      %725 = vst [vmem:[#allocation2 + $0x60] sm:$0xff] %v693
      %726 = vst [vmem:[#allocation2 + $0x68] sm:$0xff] %v694
      %727 = vst [vmem:[#allocation2 + $0x70] sm:$0xff] %v695
      %728 = vst [vmem:[#allocation2 + $0x78] sm:$0xff] %v696
      %729 = vst [vmem:[#allocation2 + $0x80] sm:$0xff] %v697
      %730 = vst [vmem:[#allocation2 + $0x88] sm:$0xff] %v698
      %731 = vst [vmem:[#allocation2 + $0x90] sm:$0xff] %v699
      %732 = vst [vmem:[#allocation2 + $0x98] sm:$0xff] %v700
      %733 = vst [vmem:[#allocation2 + $0xa0] sm:$0xff] %v701
      %734 = vst [vmem:[#allocation2 + $0xa8] sm:$0xff] %v702
      %735 = vst [vmem:[#allocation2 + $0xb0] sm:$0xff] %v703
      %736 = vst [vmem:[#allocation2 + $0xb8] sm:$0xff] %v704
      %737 = vst [vmem:[#allocation2 + $0xc0] sm:$0xff] %v705
      %738 = vst [vmem:[#allocation2 + $0xc8] sm:$0xff] %v706
      %739 = vst [vmem:[#allocation2 + $0xd0] sm:$0xff] %v707
      %740 = vst [vmem:[#allocation2 + $0xd8] sm:$0xff] %v708
      %741 = vst [vmem:[#allocation2 + $0xe0] sm:$0xff] %v709
      %742 = vst [vmem:[#allocation2 + $0xe8] sm:$0xff] %v710
      %743 = vst [vmem:[#allocation2 + $0xf0] sm:$0xff] %v711
      %744 = vst [vmem:[#allocation2 + $0xf8] sm:$0xff] %v712
      // Predicated region
      $region37: #{bottleneck_forward.3} parent=31 // pred_check
        %p745 = pneg %p260
      $region38: #{bottleneck_forward.3} parent=31 // pred_check_branch
        %747 = sbr.rel (%p745) target = $region40
      $region39: #{bottleneck_forward.3} parent=31 // pred_region
        %v748 = vld [vmem:[#allocation2] sm:$0xff]
        %v749 = vld [vmem:[#allocation2 + $0x8] sm:$0xff]
        %v750 = vld [vmem:[#allocation2 + $0x10] sm:$0xff]
        %v751 = vld [vmem:[#allocation2 + $0x18] sm:$0xff]
        %v752 = vld [vmem:[#allocation2 + $0x20] sm:$0xff]
        %v753 = vld [vmem:[#allocation2 + $0x28] sm:$0xff]
        %v754 = vld [vmem:[#allocation2 + $0x30] sm:$0xff]
        %v755 = vld [vmem:[#allocation2 + $0x38] sm:$0xff]
        %v756 = vld [vmem:[#allocation2 + $0x40] sm:$0xff]
        %v757 = vld [vmem:[#allocation2 + $0x48] sm:$0xff]
        %v758 = vld [vmem:[#allocation2 + $0x50] sm:$0xff]
        %v759 = vld [vmem:[#allocation2 + $0x58] sm:$0xff]
        %v760 = vld [vmem:[#allocation2 + $0x60] sm:$0xff]
        %v761 = vld [vmem:[#allocation2 + $0x68] sm:$0xff]
        %v762 = vld [vmem:[#allocation2 + $0x70] sm:$0xff]
        %v763 = vld [vmem:[#allocation2 + $0x78] sm:$0xff]
        %v764 = vld [vmem:[#allocation2 + $0x80] sm:$0xff]
        %v765 = vld [vmem:[#allocation2 + $0x88] sm:$0xff]
        %v766 = vld [vmem:[#allocation2 + $0x90] sm:$0xff]
        %v767 = vld [vmem:[#allocation2 + $0x98] sm:$0xff]
        %v768 = vld [vmem:[#allocation2 + $0xa0] sm:$0xff]
        %v769 = vld [vmem:[#allocation2 + $0xa8] sm:$0xff]
        %v770 = vld [vmem:[#allocation2 + $0xb0] sm:$0xff]
        %v771 = vld [vmem:[#allocation2 + $0xb8] sm:$0xff]
        %v772 = vld [vmem:[#allocation2 + $0xc0] sm:$0xff]
        %v773 = vld [vmem:[#allocation2 + $0xc8] sm:$0xff]
        %v774 = vld [vmem:[#allocation2 + $0xd0] sm:$0xff]
        %v775 = vld [vmem:[#allocation2 + $0xd8] sm:$0xff]
        %v776 = vld [vmem:[#allocation2 + $0xe0] sm:$0xff]
        %v777 = vld [vmem:[#allocation2 + $0xe8] sm:$0xff]
        %v778 = vld [vmem:[#allocation2 + $0xf0] sm:$0xff]
        %v779 = vld [vmem:[#allocation2 + $0xf8] sm:$0xff]
        %v780 = vld [vmem:[%s249] sm:$0x1]
        %v782 = vlaneseq
        %v783 = vshrl.u32 %v782, 7
        %v784 = vsub.s32 0, %v783
        %v785 = vrot.slane %v780, %v784
        %v787 = vadd.f32 %v748, %v785
        %v788 = vadd.f32 %v749, %v785
        %v789 = vadd.f32 %v750, %v785
        %v790 = vadd.f32 %v751, %v785
        %v791 = vadd.f32 %v752, %v785
        %v792 = vadd.f32 %v753, %v785
        %v793 = vadd.f32 %v754, %v785
        %v794 = vadd.f32 %v755, %v785
        %v795 = vadd.f32 %v756, %v785
        %v796 = vadd.f32 %v757, %v785
        %v797 = vadd.f32 %v758, %v785
        %v798 = vadd.f32 %v759, %v785
        %v799 = vadd.f32 %v760, %v785
        %v800 = vadd.f32 %v761, %v785
        %v801 = vadd.f32 %v762, %v785
        %v802 = vadd.f32 %v763, %v785
        %v803 = vadd.f32 %v764, %v785
        %v804 = vadd.f32 %v765, %v785
        %v805 = vadd.f32 %v766, %v785
        %v806 = vadd.f32 %v767, %v785
        %v807 = vadd.f32 %v768, %v785
        %v808 = vadd.f32 %v769, %v785
        %v809 = vadd.f32 %v770, %v785
        %v810 = vadd.f32 %v771, %v785
        %v811 = vadd.f32 %v772, %v785
        %v812 = vadd.f32 %v773, %v785
        %v813 = vadd.f32 %v774, %v785
        %v814 = vadd.f32 %v775, %v785
        %v815 = vadd.f32 %v776, %v785
        %v816 = vadd.f32 %v777, %v785
        %v817 = vadd.f32 %v778, %v785
        %v818 = vadd.f32 %v779, %v785
        %v819 = vmax.f32 %v787, 0.0
        %v820 = vmax.f32 %v788, 0.0
        %v821 = vmax.f32 %v789, 0.0
        %v822 = vmax.f32 %v790, 0.0
        %v823 = vmax.f32 %v791, 0.0
        %v824 = vmax.f32 %v792, 0.0
        %v825 = vmax.f32 %v793, 0.0
        %v826 = vmax.f32 %v794, 0.0
        %v827 = vmax.f32 %v795, 0.0
        %v828 = vmax.f32 %v796, 0.0
        %v829 = vmax.f32 %v797, 0.0
        %v830 = vmax.f32 %v798, 0.0
        %v831 = vmax.f32 %v799, 0.0
        %v832 = vmax.f32 %v800, 0.0
        %v833 = vmax.f32 %v801, 0.0
        %v834 = vmax.f32 %v802, 0.0
        %v835 = vmax.f32 %v803, 0.0
        %v836 = vmax.f32 %v804, 0.0
        %v837 = vmax.f32 %v805, 0.0
        %v838 = vmax.f32 %v806, 0.0
        %v839 = vmax.f32 %v807, 0.0
        %v840 = vmax.f32 %v808, 0.0
        %v841 = vmax.f32 %v809, 0.0
        %v842 = vmax.f32 %v810, 0.0
        %v843 = vmax.f32 %v811, 0.0
        %v844 = vmax.f32 %v812, 0.0
        %v845 = vmax.f32 %v813, 0.0
        %v846 = vmax.f32 %v814, 0.0
        %v847 = vmax.f32 %v815, 0.0
        %v848 = vmax.f32 %v816, 0.0
        %v849 = vmax.f32 %v817, 0.0
        %v850 = vmax.f32 %v818, 0.0
        %v851 = vpack.c.bf16 %v820, %v819
        %v852 = vpack.c.bf16 %v822, %v821
        %v853 = vpack.c.bf16 %v824, %v823
        %v854 = vpack.c.bf16 %v826, %v825
        %v855 = vpack.c.bf16 %v828, %v827
        %v856 = vpack.c.bf16 %v830, %v829
        %v857 = vpack.c.bf16 %v832, %v831
        %v858 = vpack.c.bf16 %v834, %v833
        %v859 = vpack.c.bf16 %v836, %v835
        %v860 = vpack.c.bf16 %v838, %v837
        %v861 = vpack.c.bf16 %v840, %v839
        %v862 = vpack.c.bf16 %v842, %v841
        %v863 = vpack.c.bf16 %v844, %v843
        %v864 = vpack.c.bf16 %v846, %v845
        %v865 = vpack.c.bf16 %v848, %v847
        %v866 = vpack.c.bf16 %v850, %v849
        %v883 = vunpack.c.l.b16 %v851
        %v884 = vunpack.c.h.b16 %v851
        %v885 = vunpack.c.l.b16 %v852
        %v886 = vunpack.c.h.b16 %v852
        %v887 = vunpack.c.l.b16 %v853
        %v888 = vunpack.c.h.b16 %v853
        %v889 = vunpack.c.l.b16 %v854
        %v890 = vunpack.c.h.b16 %v854
        %v891 = vunpack.c.l.b16 %v855
        %v892 = vunpack.c.h.b16 %v855
        %v893 = vunpack.c.l.b16 %v856
        %v894 = vunpack.c.h.b16 %v856
        %v895 = vunpack.c.l.b16 %v857
        %v896 = vunpack.c.h.b16 %v857
        %v897 = vunpack.c.l.b16 %v858
        %v898 = vunpack.c.h.b16 %v858
        %v899 = vunpack.c.l.b16 %v859
        %v900 = vunpack.c.h.b16 %v859
        %v901 = vunpack.c.l.b16 %v860
        %v902 = vunpack.c.h.b16 %v860
        %v903 = vunpack.c.l.b16 %v861
        %v904 = vunpack.c.h.b16 %v861
        %v905 = vunpack.c.l.b16 %v862
        %v906 = vunpack.c.h.b16 %v862
        %v907 = vunpack.c.l.b16 %v863
        %v908 = vunpack.c.h.b16 %v863
        %v909 = vunpack.c.l.b16 %v864
        %v910 = vunpack.c.h.b16 %v864
        %v911 = vunpack.c.l.b16 %v865
        %v912 = vunpack.c.h.b16 %v865
        %v913 = vunpack.c.l.b16 %v866
        %v914 = vunpack.c.h.b16 %v866
        %v915 = vpack.c.b16 %v883, %v883
        %v916 = vpack.c.b16 %v884, %v884
        %v917 = vpack.c.b16 %v885, %v885
        %v918 = vpack.c.b16 %v886, %v886
        %v919 = vpack.c.b16 %v887, %v887
        %v920 = vpack.c.b16 %v888, %v888
        %v921 = vpack.c.b16 %v889, %v889
        %v922 = vpack.c.b16 %v890, %v890
        %v923 = vpack.c.b16 %v891, %v891
        %v924 = vpack.c.b16 %v892, %v892
        %v925 = vpack.c.b16 %v893, %v893
        %v926 = vpack.c.b16 %v894, %v894
        %v927 = vpack.c.b16 %v895, %v895
        %v928 = vpack.c.b16 %v896, %v896
        %v929 = vpack.c.b16 %v897, %v897
        %v930 = vpack.c.b16 %v898, %v898
        %v931 = vpack.c.b16 %v899, %v899
        %v932 = vpack.c.b16 %v900, %v900
        %v933 = vpack.c.b16 %v901, %v901
        %v934 = vpack.c.b16 %v902, %v902
        %v935 = vpack.c.b16 %v903, %v903
        %v936 = vpack.c.b16 %v904, %v904
        %v937 = vpack.c.b16 %v905, %v905
        %v938 = vpack.c.b16 %v906, %v906
        %v939 = vpack.c.b16 %v907, %v907
        %v940 = vpack.c.b16 %v908, %v908
        %v941 = vpack.c.b16 %v909, %v909
        %v942 = vpack.c.b16 %v910, %v910
        %v943 = vpack.c.b16 %v911, %v911
        %v944 = vpack.c.b16 %v912, %v912
        %v945 = vpack.c.b16 %v913, %v913
        %v946 = vpack.c.b16 %v914, %v914
        %979 = vst [vmem:[%s257] sm:$0xf] %v915
        %980 = vst [vmem:[%s257 + $0x4] sm:$0xf] %v916
        %981 = vst [vmem:[%s257 + $0x8] sm:$0xf] %v917
        %982 = vst [vmem:[%s257 + $0xc] sm:$0xf] %v918
        %983 = vst [vmem:[%s257 + $0x10] sm:$0xf] %v919
        %984 = vst [vmem:[%s257 + $0x14] sm:$0xf] %v920
        %985 = vst [vmem:[%s257 + $0x18] sm:$0xf] %v921
        %986 = vst [vmem:[%s257 + $0x1c] sm:$0xf] %v922
        %987 = vst [vmem:[%s257 + $0x20] sm:$0xf] %v923
        %988 = vst [vmem:[%s257 + $0x24] sm:$0xf] %v924
        %989 = vst [vmem:[%s257 + $0x28] sm:$0xf] %v925
        %990 = vst [vmem:[%s257 + $0x2c] sm:$0xf] %v926
        %991 = vst [vmem:[%s257 + $0x30] sm:$0xf] %v927
        %992 = vst [vmem:[%s257 + $0x34] sm:$0xf] %v928
        %993 = vst [vmem:[%s257 + $0x38] sm:$0xf] %v929
        %994 = vst [vmem:[%s257 + $0x3c] sm:$0xf] %v930
        %995 = vst [vmem:[%s257 + $0x40] sm:$0xf] %v931
        %996 = vst [vmem:[%s257 + $0x44] sm:$0xf] %v932
        %997 = vst [vmem:[%s257 + $0x48] sm:$0xf] %v933
        %998 = vst [vmem:[%s257 + $0x4c] sm:$0xf] %v934
        %999 = vst [vmem:[%s257 + $0x50] sm:$0xf] %v935
        %1000 = vst [vmem:[%s257 + $0x54] sm:$0xf] %v936
        %1001 = vst [vmem:[%s257 + $0x58] sm:$0xf] %v937
        %1002 = vst [vmem:[%s257 + $0x5c] sm:$0xf] %v938
        %1003 = vst [vmem:[%s257 + $0x60] sm:$0xf] %v939
        %1004 = vst [vmem:[%s257 + $0x64] sm:$0xf] %v940
        %1005 = vst [vmem:[%s257 + $0x68] sm:$0xf] %v941
        %1006 = vst [vmem:[%s257 + $0x6c] sm:$0xf] %v942
        %1007 = vst [vmem:[%s257 + $0x70] sm:$0xf] %v943
        %1008 = vst [vmem:[%s257 + $0x74] sm:$0xf] %v944
        %1009 = vst [vmem:[%s257 + $0x78] sm:$0xf] %v945
        %1010 = vst [vmem:[%s257 + $0x7c] sm:$0xf] %v946
      $region40: #{bottleneck_forward.3} parent=31 // pred_fallthru
        _
      %s1011 = smul.u32 32, %s19
      %p1012 = scmp.lt.s32.totalorder %s1011, 63
      %s1013 = scalar_select %p1012, %s1011, 63
      %p1014 = scmp.lt.s32.totalorder %s20, 0
      %s1015 = scalar_select %p1014, %s20, 0
      %s1016 = sadd.s32 %s1015, %s1013
      %s1017 = smul.addr %s1016, 4
      %s1018 = scalar_lea.vmem %s3, %s1017
      // Predicated region
      $region41: #{bottleneck_forward.3} parent=31 // pred_check
        %p1019 = pneg %p135
      $region42: #{bottleneck_forward.3} parent=31 // pred_check_branch
        %1021 = sbr.rel (%p1019) target = $region44
      $region43: #{bottleneck_forward.3} parent=31 // pred_region
        %s1022 = smul.u32 32, %s19
      $region44: #{bottleneck_forward.3} parent=31 // pred_fallthru
        _
    $region32: #{bottleneck_forward.3} parent=5 // pred_fallthru
      _
    %p1023 = scmp.le.s32.totalorder 2, %s9
    // Predicated region
    $region45: #{bottleneck_forward.3} parent=5 // pred_check
      %p1024 = pneg %p1023
    $region46: #{bottleneck_forward.3} parent=5 // pred_check_branch
      %1026 = sbr.rel (%p1024) target = $region48
    $region47: #{bottleneck_forward.3} parent=5 // pred_region
      %s1027 = ssub.s32 %s9, 2
      // Predicated region
      $region49: #{bottleneck_forward.3} parent=47 // pred_check
        %p1028 = pneg %p141
      $region50: #{bottleneck_forward.3} parent=47 // pred_check_branch
        %1030 = sbr.rel (%p1028) target = $region52
      $region51: #{bottleneck_forward.3} parent=47 // pred_region
        %s1031 = smul.u32 32, %s22
        %p1032 = scmp.lt.s32.totalorder %s1031, 63
        %s1033 = scalar_select %p1032, %s1031, 63
        %p1034 = scmp.lt.s32.totalorder %s23, 0
        %s1035 = scalar_select %p1034, %s23, 0
        %s1036 = sadd.s32 %s1035, %s1033
        %s1037 = smul.addr %s1036, 4
        %s1038 = scalar_lea.vmem %s3, %s1037
      $region52: #{bottleneck_forward.3} parent=47 // pred_fallthru
        _
    $region48: #{bottleneck_forward.3} parent=5 // pred_fallthru
      _
  $region6: #{bottleneck_forward.3} parent=0 // loop_footer
    %s13 = sadd.s32 1, %s9
  $region7: #{bottleneck_forward.3} parent=0 // loop_footer_branch
    %8 = sbr.rel target = $region3
  $region8: #{bottleneck_forward.3} parent=0 // loop_exit
    _

// kernel: bottleneck_forward.5
$region0: #{bottleneck_forward.5}
  #allocation0 [shape = 'u32[]', space=smem, size = 0x4, offset = 0x4, fixed_abs, tag = 'smem constant byte address 0x4 - core index']
  #allocation1 [shape = 'u32[144,128]{1,0:T(1,128)}', space=vmem, size = 0x12000, scoped, tag = 'internal scratch']
  #allocation2 [shape = 'f32[64,128]{1,0:T(8,128)}', space=vmem, size = 0x8000, scoped, tag = 'scratch operand']
  %s0 = inlined_call_operand.vmem [shape: bf16[128,128], index: 0, kind: input, shape index: {}]
  %s1 = inlined_call_operand.vmem [shape: bf16[128,128], index: 1, kind: input, shape index: {}]
  %s2 = inlined_call_operand.vmem [shape: bf16[128,128], index: 2, kind: input, shape index: {}]
  %s3 = inlined_call_operand.vmem [shape: bf16[128,128], index: 3, kind: input, shape index: {}]
  %s4 = inlined_call_operand.vmem [shape: f32[1,128], index: 4, kind: input, shape index: {}]
  %s5 = inlined_call_operand.hbm [shape: f32[128,128], index: 5, kind: output, shape index: {}]
  %s6 = sld [smem:[#allocation0]]
  $region69: #{bottleneck_forward.5} parent=0
    _
  %s8 = ssub.s32 1, %s6
  %s9 = scalar_select 0, %s8, %s6
  $region1: #{bottleneck_forward.5} parent=0
    #allocation3 [shape = 'u8[65536]{0}', space=vmem, size = 0x10000, scoped, tag = 'output window, operand 0']
    #allocation4 [shape = 's32[2]{0}', space=sflag, size = 0x8, scoped, tag = 'scoped memory for bottleneck_forward.5']
    %10 = vsyncpa [#allocation4], 0
    %s11 = scalar_lea.sflag [#allocation4], 1
    %12 = vsyncpa %s11, 0
    loop: start=0, step=1, limit=6
    $region2: #{bottleneck_forward.5} parent=1 // loop_pre_header
      _
    $region3: #{bottleneck_forward.5} parent=1 // loop_header
      %s14 = sphi 0, %s18
      %p15 = scmp.ge.s32.totalorder %s14, 6
      %s21 = sphi 0, %s40
      %s22 = sphi 0, %s36
      %s23 = sphi 0, %s32
      %s24 = sphi 0, %s21
      %s25 = sphi 0, %s22
      %s26 = sphi 0, %s23
      %s27 = sphi 0, %s24
      %s28 = sphi 0, %s25
      %s29 = sphi 0, %s26
      %s49 = sphi 0, %s51
      %s52 = sphi 0, %s49
      %s53 = sphi 0, %s52
      %s69 = sphi 0, %s53
      %s81 = sphi 0, %s83
      %s84 = sphi 0, %s81
      %s85 = sphi 0, %s84
      %s101 = sphi 0, %s85
      %s115 = sphi 0, %s117
      %s118 = sphi 0, %s115
      %s119 = sphi 0, %s118
      %s135 = sphi 0, %s119
      %s149 = sphi 0, %s151
      %s152 = sphi 0, %s149
      %s153 = sphi 0, %s152
      %s169 = sphi 0, %s153
      %s175 = sphi 0, %s177
      %s178 = sphi 0, %s175
      %s179 = sphi 0, %s178
      %s195 = sphi 0, %s179
      %s203 = sphi 0, %s205
      %s206 = sphi 0, %s203
      %s207 = sphi 0, %s206
      %s223 = sphi 0, %s207
    $region4: #{bottleneck_forward.5} parent=1 // loop_header_branch
      %17 = sbr.rel (%p15) target = $region8
    $region5: #{bottleneck_forward.5} parent=1 // loop_body
      %s19 = ssub.s32 %s14, 1
      %s20 = ssub.s32 %s14, 2
      %s30 = sadd.s32 1, %s23
      %p31 = scmp.ge.s32.totalorder %s30, 2
      %s32 = scalar_select %p31, 0, %s30
      %s33 = sadd.s32 1, %s22
      %s34 = scalar_select %p31, %s33, %s22
      %p35 = scmp.ge.s32.totalorder %s34, 1
      %s36 = scalar_select %p35, 0, %s34
      %s37 = sadd.s32 1, %s21
      %s38 = scalar_select %p35, %s37, %s21
      %p39 = scmp.ge.s32.totalorder %s38, 2
      %s40 = scalar_select %p39, 0, %s38
      %p41 = scmp.lt.s32.totalorder %s23, 0
      %s42 = scalar_select %p41, %s23, 0
      %p43 = scmp.lt.s32.totalorder %s32, 0
      %s44 = scalar_select %p43, %s32, 0
      %s45 = ssub.s32 %s21, %s40
      %s46 = ssub.s32 %s42, %s44
      %s47 = sor.u32 %s45, %s46
      %p48 = scmp.eq.s32.totalorder %s47, 0
      %s50 = sadd.s32 %s49, 1
      %s51 = scalar_select %p48, %s49, %s50
      %p54 = pneg %p48
      %p55 = scmp.eq.s32.totalorder %s14, 3
      %p56 = por %p54, %p55
      %p57 = scmp.ne.s32.totalorder %s49, %s52
      %p58 = scmp.eq.s32.totalorder %s14, 0
      %p59 = por %p57, %p58
      %p60 = scmp.ne.s32.totalorder %s49, %s52
      %p61 = scmp.eq.s32.totalorder %s19, 3
      %p62 = por %p60, %p61
      %p63 = scmp.ne.s32.totalorder %s52, %s53
      %p64 = scmp.eq.s32.totalorder %s19, 0
      %p65 = por %p63, %p64
      %p66 = scmp.ne.s32.totalorder %s52, %s53
      %p67 = scmp.eq.s32.totalorder %s20, 3
      %p68 = por %p66, %p67
      %p70 = scmp.ne.s32.totalorder %s53, %s69
      %p71 = scmp.eq.s32.totalorder %s20, 0
      %p72 = por %p70, %p71
      %p73 = scmp.lt.s32.totalorder %s23, 0
      %s74 = scalar_select %p73, %s23, 0
      %p75 = scmp.lt.s32.totalorder %s32, 0
      %s76 = scalar_select %p75, %s32, 0
      %s77 = ssub.s32 %s74, %s76
      %s78 = ssub.s32 %s22, %s36
      %s79 = sor.u32 %s77, %s78
      %p80 = scmp.eq.s32.totalorder %s79, 0
      %s82 = sadd.s32 %s81, 1
      %s83 = scalar_select %p80, %s81, %s82
      %p86 = pneg %p80
      %p87 = scmp.eq.s32.totalorder %s14, 3
      %p88 = por %p86, %p87
      %p89 = scmp.ne.s32.totalorder %s81, %s84
      %p90 = scmp.eq.s32.totalorder %s14, 0
      %p91 = por %p89, %p90
      %p92 = scmp.ne.s32.totalorder %s81, %s84
      %p93 = scmp.eq.s32.totalorder %s19, 3
      %p94 = por %p92, %p93
      %p95 = scmp.ne.s32.totalorder %s84, %s85
      %p96 = scmp.eq.s32.totalorder %s19, 0
      %p97 = por %p95, %p96
      %p98 = scmp.ne.s32.totalorder %s84, %s85
      %p99 = scmp.eq.s32.totalorder %s20, 3
      %p100 = por %p98, %p99
      %p102 = scmp.ne.s32.totalorder %s85, %s101
      %p103 = scmp.eq.s32.totalorder %s20, 0
      %p104 = por %p102, %p103
      %s105 = ssub.s32 %s23, 1
      %p106 = scmp.gt.s32.totalorder %s105, 0
      %s107 = scalar_select %p106, %s105, 0
      %s108 = ssub.s32 %s32, 1
      %p109 = scmp.gt.s32.totalorder %s108, 0
      %s110 = scalar_select %p109, %s108, 0
      %s111 = ssub.s32 %s21, %s40
      %s112 = ssub.s32 %s107, %s110
      %s113 = sor.u32 %s111, %s112
      %p114 = scmp.eq.s32.totalorder %s113, 0
      %s116 = sadd.s32 %s115, 1
      %s117 = scalar_select %p114, %s115, %s116
      %p120 = pneg %p114
      %p121 = scmp.eq.s32.totalorder %s14, 3
      %p122 = por %p120, %p121
      %p123 = scmp.ne.s32.totalorder %s115, %s118
      %p124 = scmp.eq.s32.totalorder %s14, 0
      %p125 = por %p123, %p124
      %p126 = scmp.ne.s32.totalorder %s115, %s118
      %p127 = scmp.eq.s32.totalorder %s19, 3
      %p128 = por %p126, %p127
      %p129 = scmp.ne.s32.totalorder %s118, %s119
      %p130 = scmp.eq.s32.totalorder %s19, 0
      %p131 = por %p129, %p130
      %p132 = scmp.ne.s32.totalorder %s118, %s119
      %p133 = scmp.eq.s32.totalorder %s20, 3
      %p134 = por %p132, %p133
      %p136 = scmp.ne.s32.totalorder %s119, %s135
      %p137 = scmp.eq.s32.totalorder %s20, 0
      %p138 = por %p136, %p137
      %s139 = ssub.s32 %s23, 1
      %p140 = scmp.gt.s32.totalorder %s139, 0
      %s141 = scalar_select %p140, %s139, 0
      %s142 = ssub.s32 %s32, 1
      %p143 = scmp.gt.s32.totalorder %s142, 0
      %s144 = scalar_select %p143, %s142, 0
      %s145 = ssub.s32 %s141, %s144
      %s146 = ssub.s32 %s22, %s36
      %s147 = sor.u32 %s145, %s146
      %p148 = scmp.eq.s32.totalorder %s147, 0
      %s150 = sadd.s32 %s149, 1
      %s151 = scalar_select %p148, %s149, %s150
      %p154 = pneg %p148
      %p155 = scmp.eq.s32.totalorder %s14, 3
      %p156 = por %p154, %p155
      %p157 = scmp.ne.s32.totalorder %s149, %s152
      %p158 = scmp.eq.s32.totalorder %s14, 0
      %p159 = por %p157, %p158
      %p160 = scmp.ne.s32.totalorder %s149, %s152
      %p161 = scmp.eq.s32.totalorder %s19, 3
      %p162 = por %p160, %p161
      %p163 = scmp.ne.s32.totalorder %s152, %s153
      %p164 = scmp.eq.s32.totalorder %s19, 0
      %p165 = por %p163, %p164
      %p166 = scmp.ne.s32.totalorder %s152, %s153
      %p167 = scmp.eq.s32.totalorder %s20, 3
      %p168 = por %p166, %p167
      %p170 = scmp.ne.s32.totalorder %s153, %s169
      %p171 = scmp.eq.s32.totalorder %s20, 0
      %p172 = por %p170, %p171
      %s173 = ssub.s32 %s22, %s36
      %p174 = scmp.eq.s32.totalorder %s173, 0
      %s176 = sadd.s32 %s175, 1
      %s177 = scalar_select %p174, %s175, %s176
      %p180 = pneg %p174
      %p181 = scmp.eq.s32.totalorder %s14, 3
      %p182 = por %p180, %p181
      %p183 = scmp.ne.s32.totalorder %s175, %s178
      %p184 = scmp.eq.s32.totalorder %s14, 0
      %p185 = por %p183, %p184
      %p186 = scmp.ne.s32.totalorder %s175, %s178
      %p187 = scmp.eq.s32.totalorder %s19, 3
      %p188 = por %p186, %p187
      %p189 = scmp.ne.s32.totalorder %s178, %s179
      %p190 = scmp.eq.s32.totalorder %s19, 0
      %p191 = por %p189, %p190
      %p192 = scmp.ne.s32.totalorder %s178, %s179
      %p193 = scmp.eq.s32.totalorder %s20, 3
      %p194 = por %p192, %p193
      %p196 = scmp.ne.s32.totalorder %s179, %s195
      %p197 = scmp.eq.s32.totalorder %s20, 0
      %p198 = por %p196, %p197
      %s199 = ssub.s32 %s21, %s40
      %s200 = ssub.s32 %s22, %s36
      %s201 = sor.u32 %s199, %s200
      %p202 = scmp.eq.s32.totalorder %s201, 0
      %s204 = sadd.s32 %s203, 1
      %s205 = scalar_select %p202, %s203, %s204
      %p208 = pneg %p202
      %p209 = scmp.eq.s32.totalorder %s14, 3
      %p210 = por %p208, %p209
      %p211 = scmp.ne.s32.totalorder %s203, %s206
      %p212 = scmp.eq.s32.totalorder %s14, 0
      %p213 = por %p211, %p212
      %p214 = scmp.ne.s32.totalorder %s203, %s206
      %p215 = scmp.eq.s32.totalorder %s19, 3
      %p216 = por %p214, %p215
      %p217 = scmp.ne.s32.totalorder %s206, %s207
      %p218 = scmp.eq.s32.totalorder %s19, 0
      %p219 = por %p217, %p218
      %p220 = scmp.ne.s32.totalorder %s206, %s207
      %p221 = scmp.eq.s32.totalorder %s20, 3
      %p222 = por %p220, %p221
      %p224 = scmp.ne.s32.totalorder %s207, %s223
      %p225 = scmp.eq.s32.totalorder %s20, 0
      %p226 = por %p224, %p225
      %p227 = scmp.le.s32.totalorder 1, %s14
      %p228 = scmp.lt.s32.totalorder %s14, 5
      %p229 = pnand %p227, %p228
      %p230 = pneg %p229
      // Predicated region
      $region9: #{bottleneck_forward.5} parent=5 // pred_check
        _
      $region10: #{bottleneck_forward.5} parent=5 // pred_check_branch
        %232 = sbr.rel (%p229) target = $region12
      $region11: #{bottleneck_forward.5} parent=5 // pred_region
        %s233 = ssub.s32 %s14, 1
        // Predicated region
        $region13: #{bottleneck_forward.5} parent=11 // pred_check
          %p234 = pneg %p191
        $region14: #{bottleneck_forward.5} parent=11 // pred_check_branch
          %236 = sbr.rel (%p234) target = $region16
        $region15: #{bottleneck_forward.5} parent=11 // pred_region
          %p237 = scmp.lt.s32.totalorder %s25, 0
          %s238 = scalar_select %p237, %s25, 0
          %s239 = scalar_lea.vmem %s4, %s238
        $region16: #{bottleneck_forward.5} parent=11 // pred_fallthru
          _
      $region12: #{bottleneck_forward.5} parent=5 // pred_fallthru
        _
      %p240 = scmp.lt.s32.totalorder %s14, 4
      // Predicated region
      $region17: #{bottleneck_forward.5} parent=5 // pred_check
        %p241 = pneg %p240
      $region18: #{bottleneck_forward.5} parent=5 // pred_check_branch
        %243 = sbr.rel (%p241) target = $region20
      $region19: #{bottleneck_forward.5} parent=5 // pred_region
        // Predicated region
        $region21: #{bottleneck_forward.5} parent=19 // pred_check
          %p244 = pneg %p59
        $region22: #{bottleneck_forward.5} parent=19 // pred_check_branch
          %246 = sbr.rel (%p244) target = $region24
        $region23: #{bottleneck_forward.5} parent=19 // pred_region
          %p247 = scmp.lt.s32.totalorder %s23, 0
          %s248 = scalar_select %p247, %s23, 0
          %s249 = smul.u32 8, %s21
          %p250 = scmp.lt.s32.totalorder %s249, 15
          %s251 = scalar_select %p250, %s249, 15
          %p252 = scmp.lt.s32.totalorder %s248, 0
          %s253 = scalar_select %p252, %s248, 0
          %s254 = sadd.s32 %s253, %s251
          %s255 = smul.addr %s254, 4
          %s256 = scalar_lea.vmem %s0, %s255
          %p257 = scmp.lt.s32.totalorder %s23, 0
          %s258 = scalar_select %p257, %s23, 0
          %s259 = smul.u32 8, %s21
        $region24: #{bottleneck_forward.5} parent=19 // pred_fallthru
          _
        // Predicated region
        $region25: #{bottleneck_forward.5} parent=19 // pred_check
          %p260 = pneg %p91
        $region26: #{bottleneck_forward.5} parent=19 // pred_check_branch
          %262 = sbr.rel (%p260) target = $region28
        $region27: #{bottleneck_forward.5} parent=19 // pred_region
          %p263 = scmp.lt.s32.totalorder %s23, 0
          %s264 = scalar_select %p263, %s23, 0
          %s265 = smul.u32 16, %s264
          %p266 = scmp.lt.s32.totalorder %s265, 15
          %s267 = scalar_select %p266, %s265, 15
          %p268 = scmp.lt.s32.totalorder %s22, 0
          %s269 = scalar_select %p268, %s22, 0
          %s270 = sadd.s32 %s269, %s267
          %s271 = smul.addr %s270, 4
          %s272 = scalar_lea.vmem %s1, %s271
          %p273 = scmp.lt.s32.totalorder %s23, 0
          %s274 = scalar_select %p273, %s23, 0
          %s275 = smul.u32 16, %s274
        $region28: #{bottleneck_forward.5} parent=19 // pred_fallthru
          _
        // Predicated region
        $region29: #{bottleneck_forward.5} parent=19 // pred_check
          %p276 = pneg %p125
        $region30: #{bottleneck_forward.5} parent=19 // pred_check_branch
          %278 = sbr.rel (%p276) target = $region32
        $region31: #{bottleneck_forward.5} parent=19 // pred_region
          %s279 = ssub.s32 %s23, 1
          %p280 = scmp.gt.s32.totalorder %s279, 0
          %s281 = scalar_select %p280, %s279, 0
          %s282 = smul.u32 8, %s21
          %p283 = scmp.lt.s32.totalorder %s282, 15
          %s284 = scalar_select %p283, %s282, 15
          %p285 = scmp.lt.s32.totalorder %s281, 0
          %s286 = scalar_select %p285, %s281, 0
          %s287 = sadd.s32 %s286, %s284
          %s288 = smul.addr %s287, 4
          %s289 = scalar_lea.vmem %s2, %s288
          %s290 = ssub.s32 %s23, 1
          %p291 = scmp.gt.s32.totalorder %s290, 0
          %s292 = scalar_select %p291, %s290, 0
          %s293 = smul.u32 8, %s21
        $region32: #{bottleneck_forward.5} parent=19 // pred_fallthru
          _
        // Predicated region
        $region33: #{bottleneck_forward.5} parent=19 // pred_check
          %p294 = pneg %p159
        $region34: #{bottleneck_forward.5} parent=19 // pred_check_branch
          %296 = sbr.rel (%p294) target = $region36
        $region35: #{bottleneck_forward.5} parent=19 // pred_region
          %s297 = ssub.s32 %s23, 1
          %p298 = scmp.gt.s32.totalorder %s297, 0
          %s299 = scalar_select %p298, %s297, 0
          %s300 = smul.u32 16, %s299
          %p301 = scmp.lt.s32.totalorder %s300, 15
          %s302 = scalar_select %p301, %s300, 15
          %p303 = scmp.lt.s32.totalorder %s22, 0
          %s304 = scalar_select %p303, %s22, 0
          %s305 = sadd.s32 %s304, %s302
          %s306 = smul.addr %s305, 4
          %s307 = scalar_lea.vmem %s3, %s306
          %s308 = ssub.s32 %s23, 1
          %p309 = scmp.gt.s32.totalorder %s308, 0
          %s310 = scalar_select %p309, %s308, 0
          %s311 = smul.u32 16, %s310
        $region36: #{bottleneck_forward.5} parent=19 // pred_fallthru
          _
      $region20: #{bottleneck_forward.5} parent=5 // pred_fallthru
        _
      %p312 = scmp.le.s32.totalorder 1, %s14
      %p313 = scmp.lt.s32.totalorder %s14, 5
      %p314 = pnand %p312, %p313
      %p315 = pneg %p314
      // Predicated region
      $region37: #{bottleneck_forward.5} parent=5 // pred_check
        _
      $region38: #{bottleneck_forward.5} parent=5 // pred_check_branch
        %317 = sbr.rel (%p314) target = $region40
      $region39: #{bottleneck_forward.5} parent=5 // pred_region
        %s318 = ssub.s32 %s14, 1
        %p319 = scmp.lt.s32.totalorder %s26, 0
        %s320 = scalar_select %p319, %s26, 0
        %s321 = smul.u32 8, %s24
        %p322 = scmp.lt.s32.totalorder %s321, 15
        %s323 = scalar_select %p322, %s321, 15
        %p324 = scmp.lt.s32.totalorder %s320, 0
        %s325 = scalar_select %p324, %s320, 0
        %s326 = sadd.s32 %s325, %s323
        %s327 = smul.addr %s326, 4
        %s328 = scalar_lea.vmem %s0, %s327
        %p329 = pneg %p65
        %p330 = pneg %p62
        %p331 = scmp.lt.s32.totalorder %s26, 0
        %s332 = scalar_select %p331, %s26, 0
        %s333 = smul.u32 16, %s332
        %p334 = scmp.lt.s32.totalorder %s333, 15
        %s335 = scalar_select %p334, %s333, 15
        %p336 = scmp.lt.s32.totalorder %s25, 0
        %s337 = scalar_select %p336, %s25, 0
        %s338 = sadd.s32 %s337, %s335
        %s339 = smul.addr %s338, 4
        %s340 = scalar_lea.vmem %s1, %s339
        %p341 = pneg %p97
        %p342 = pneg %p94
        %s343 = ssub.s32 %s26, 1
        %p344 = scmp.gt.s32.totalorder %s343, 0
        %s345 = scalar_select %p344, %s343, 0
        %s346 = smul.u32 8, %s24
        %p347 = scmp.lt.s32.totalorder %s346, 15
        %s348 = scalar_select %p347, %s346, 15
        %p349 = scmp.lt.s32.totalorder %s345, 0
        %s350 = scalar_select %p349, %s345, 0
        %s351 = sadd.s32 %s350, %s348
        %s352 = smul.addr %s351, 4
        %s353 = scalar_lea.vmem %s2, %s352
        %p354 = pneg %p131
        %p355 = pneg %p128
        %s356 = ssub.s32 %s26, 1
        %p357 = scmp.gt.s32.totalorder %s356, 0
        %s358 = scalar_select %p357, %s356, 0
        %s359 = smul.u32 16, %s358
        %p360 = scmp.lt.s32.totalorder %s359, 15
        %s361 = scalar_select %p360, %s359, 15
        %p362 = scmp.lt.s32.totalorder %s25, 0
        %s363 = scalar_select %p362, %s25, 0
        %s364 = sadd.s32 %s363, %s361
        %s365 = smul.addr %s364, 4
        %s366 = scalar_lea.vmem %s3, %s365
        %p367 = pneg %p165
        %p368 = pneg %p162
        %p369 = scmp.lt.s32.totalorder %s25, 0
        %s370 = scalar_select %p369, %s25, 0
        %s371 = scalar_lea.vmem %s4, %s370
        %p372 = pneg %p191
        %p373 = pneg %p188
        %p374 = pneg %p219
        %p375 = pneg %p216
        %s376 = sand.u32 %s206, 1
        %s377 = scalar_lea.sflag [#allocation4], %s376
        %s378 = sand.u32 %s206, 1
        %s379 = smul.addr %s378, 64
        %s380 = scalar_lea.vmem [#allocation3], %s379
        %p381 = scmp.lt.s32.totalorder %s26, 0
        %s382 = scalar_select %p381, %s26, 0
        %s383 = smul.u32 8, %s24
        %p384 = scmp.lt.s32.totalorder %s383, 15
        %s385 = scalar_select %p384, %s383, 15
        %p386 = scmp.lt.s32.totalorder %s382, 0
        %s387 = scalar_select %p386, %s382, 0
        %s388 = sadd.s32 %s387, %s385
        %s389 = smul.addr %s388, 4
        %s390 = scalar_lea.vmem %s0, %s389
        %p391 = scmp.lt.s32.totalorder %s26, 0
        %s392 = scalar_select %p391, %s26, 0
        %s393 = smul.u32 8, %s24
        %p394 = scmp.lt.s32.totalorder %s26, 0
        %s395 = scalar_select %p394, %s26, 0
        %s396 = smul.u32 16, %s395
        %p397 = scmp.lt.s32.totalorder %s396, 15
        %s398 = scalar_select %p397, %s396, 15
        %p399 = scmp.lt.s32.totalorder %s25, 0
        %s400 = scalar_select %p399, %s25, 0
        %s401 = sadd.s32 %s400, %s398
        %s402 = smul.addr %s401, 4
        %s403 = scalar_lea.vmem %s1, %s402
        %p404 = scmp.lt.s32.totalorder %s26, 0
        %s405 = scalar_select %p404, %s26, 0
        %s406 = smul.u32 16, %s405
        %s407 = ssub.s32 %s26, 1
        %p408 = scmp.gt.s32.totalorder %s407, 0
        %s409 = scalar_select %p408, %s407, 0
        %s410 = smul.u32 8, %s24
        %p411 = scmp.lt.s32.totalorder %s410, 15
        %s412 = scalar_select %p411, %s410, 15
        %p413 = scmp.lt.s32.totalorder %s409, 0
        %s414 = scalar_select %p413, %s409, 0
        %s415 = sadd.s32 %s414, %s412
        %s416 = smul.addr %s415, 4
        %s417 = scalar_lea.vmem %s2, %s416
        %s418 = ssub.s32 %s26, 1
        %p419 = scmp.gt.s32.totalorder %s418, 0
        %s420 = scalar_select %p419, %s418, 0
        %s421 = smul.u32 8, %s24
        %s422 = ssub.s32 %s26, 1
        %p423 = scmp.gt.s32.totalorder %s422, 0
        %s424 = scalar_select %p423, %s422, 0
        %s425 = smul.u32 16, %s424
        %p426 = scmp.lt.s32.totalorder %s425, 15
        %s427 = scalar_select %p426, %s425, 15
        %p428 = scmp.lt.s32.totalorder %s25, 0
        %s429 = scalar_select %p428, %s25, 0
        %s430 = sadd.s32 %s429, %s427
        %s431 = smul.addr %s430, 4
        %s432 = scalar_lea.vmem %s3, %s431
        %s433 = ssub.s32 %s26, 1
        %p434 = scmp.gt.s32.totalorder %s433, 0
        %s435 = scalar_select %p434, %s433, 0
        %s436 = smul.u32 16, %s435
        %p437 = scmp.lt.s32.totalorder %s25, 0
        %s438 = scalar_select %p437, %s25, 0
        %s439 = scalar_lea.vmem %s4, %s438
        %s440 = smul.u32 8, %s24
        %p442 = scmp.eq.s32.totalorder %s26, 0
        // Predicated region
        $region41: #{bottleneck_forward.5} parent=39 // pred_check
          %p443 = pneg %p442
        $region42: #{bottleneck_forward.5} parent=39 // pred_check_branch
          %445 = sbr.rel (%p443) target = $region44
        $region43: #{bottleneck_forward.5} parent=39 // pred_region
          %446 = vst [vmem:[#allocation2] sm:$0xff] 0.0
          %447 = vst [vmem:[#allocation2 + $0x8] sm:$0xff] 0.0
          %448 = vst [vmem:[#allocation2 + $0x10] sm:$0xff] 0.0
          %449 = vst [vmem:[#allocation2 + $0x18] sm:$0xff] 0.0
          %450 = vst [vmem:[#allocation2 + $0x20] sm:$0xff] 0.0
          %451 = vst [vmem:[#allocation2 + $0x28] sm:$0xff] 0.0
          %452 = vst [vmem:[#allocation2 + $0x30] sm:$0xff] 0.0
          %453 = vst [vmem:[#allocation2 + $0x38] sm:$0xff] 0.0
        $region44: #{bottleneck_forward.5} parent=39 // pred_fallthru
          _
        %p454 = scmp.lt.s32.totalorder %s26, 1
        // Predicated region
        $region45: #{bottleneck_forward.5} parent=39 // pred_check
          %p455 = pneg %p454
        $region46: #{bottleneck_forward.5} parent=39 // pred_check_branch
          %457 = sbr.rel (%p455) target = $region48
        $region47: #{bottleneck_forward.5} parent=39 // pred_region
          %v458 = vld [vmem:[#allocation2] sm:$0xff]
          %v459 = vld [vmem:[#allocation2 + $0x8] sm:$0xff]
          %v460 = vld [vmem:[#allocation2 + $0x10] sm:$0xff]
          %v461 = vld [vmem:[#allocation2 + $0x18] sm:$0xff]
          %v462 = vld [vmem:[#allocation2 + $0x20] sm:$0xff]
          %v463 = vld [vmem:[#allocation2 + $0x28] sm:$0xff]
          %v464 = vld [vmem:[#allocation2 + $0x30] sm:$0xff]
          %v465 = vld [vmem:[#allocation2 + $0x38] sm:$0xff]
          %v466 = vld [vmem:[%s390] sm:$0xf]
          %v467 = vld [vmem:[%s390 + $0x4] sm:$0xf]
          %v468 = vld [vmem:[%s390 + $0x8] sm:$0xf]
          %v469 = vld [vmem:[%s390 + $0xc] sm:$0xf]
          %v470 = vld [vmem:[%s390 + $0x10] sm:$0xf]
          %v471 = vld [vmem:[%s390 + $0x14] sm:$0xf]
          %v472 = vld [vmem:[%s390 + $0x18] sm:$0xf]
          %v473 = vld [vmem:[%s390 + $0x1c] sm:$0xf]
          %v474 = vld [vmem:[%s403] sm:$0xf]
          %v475 = vld [vmem:[%s403 + $0x4] sm:$0xf]
          %v476 = vld [vmem:[%s403 + $0x8] sm:$0xf]
          %v477 = vld [vmem:[%s403 + $0xc] sm:$0xf]
          %v478 = vld [vmem:[%s403 + $0x10] sm:$0xf]
          %v479 = vld [vmem:[%s403 + $0x14] sm:$0xf]
          %v480 = vld [vmem:[%s403 + $0x18] sm:$0xf]
          %v481 = vld [vmem:[%s403 + $0x1c] sm:$0xf]
          %v482 = vld [vmem:[%s403 + $0x20] sm:$0xf]
          %v483 = vld [vmem:[%s403 + $0x24] sm:$0xf]
          %v484 = vld [vmem:[%s403 + $0x28] sm:$0xf]
          %v485 = vld [vmem:[%s403 + $0x2c] sm:$0xf]
          %v486 = vld [vmem:[%s403 + $0x30] sm:$0xf]
          %v487 = vld [vmem:[%s403 + $0x34] sm:$0xf]
          %v488 = vld [vmem:[%s403 + $0x38] sm:$0xf]
          %v489 = vld [vmem:[%s403 + $0x3c] sm:$0xf]
          %v498 = vunpack.c.l.b16 %v466
          %v499 = vunpack.c.l.b16 %v467
          %v500 = vunpack.c.l.b16 %v468
          %v501 = vunpack.c.l.b16 %v469
          %v502 = vunpack.c.l.b16 %v470
          %v503 = vunpack.c.l.b16 %v471
          %v504 = vunpack.c.l.b16 %v472
          %v505 = vunpack.c.l.b16 %v473
          %v506 = vpack.c.b16 %v499, %v498
          %v507 = vpack.c.b16 %v501, %v500
          %v508 = vpack.c.b16 %v503, %v502
          %v509 = vpack.c.b16 %v505, %v504
          %v530 = vunpack.c.l.b16 %v474
          %v531 = vunpack.c.l.b16 %v475
          %v532 = vunpack.c.l.b16 %v476
          %v533 = vunpack.c.l.b16 %v477
          %v534 = vunpack.c.l.b16 %v478
          %v535 = vunpack.c.l.b16 %v479
          %v536 = vunpack.c.l.b16 %v480
          %v537 = vunpack.c.l.b16 %v481
          %v538 = vunpack.c.l.b16 %v482
          %v539 = vunpack.c.l.b16 %v483
          %v540 = vunpack.c.l.b16 %v484
          %v541 = vunpack.c.l.b16 %v485
          %v542 = vunpack.c.l.b16 %v486
          %v543 = vunpack.c.l.b16 %v487
          %v544 = vunpack.c.l.b16 %v488
          %v545 = vunpack.c.l.b16 %v489
          %v546 = vpack.c.b16 %v531, %v530
          %v547 = vpack.c.b16 %v533, %v532
          %v548 = vpack.c.b16 %v535, %v534
          %v549 = vpack.c.b16 %v537, %v536
          %v550 = vpack.c.b16 %v539, %v538
          %v551 = vpack.c.b16 %v541, %v540
          %v552 = vpack.c.b16 %v543, %v542
          %v553 = vpack.c.b16 %v545, %v544
          %562 = vmatprep.subr.bf16.mxu0 0
          %563 = vmatpush1.bf16.msra.mxu0 %v546
          %564 = vmatprep.subr.bf16.mxu0 0
          %565 = vmatpush1.bf16.msra.mxu0 %v547
          %566 = vmatprep.subr.bf16.mxu0 0
          %567 = vmatpush1.bf16.msra.mxu0 %v548
          %568 = vmatprep.subr.bf16.mxu0 0
          %569 = vmatpush1.bf16.msra.mxu0 %v549
          %570 = vmatprep.subr.bf16.mxu0 0
          %571 = vmatpush1.bf16.msra.mxu0 %v550
          %572 = vmatprep.subr.bf16.mxu0 0
          %573 = vmatpush1.bf16.msra.mxu0 %v551
          %574 = vmatprep.subr.bf16.mxu0 0
          %575 = vmatpush1.bf16.msra.mxu0 %v552
          %576 = vmatprep.subr.bf16.mxu0 0
          %577 = vmatpush1.bf16.msra.mxu0 %v553
          %578 = vmatprep.subr.bf16.mxu0 0
          %579 = vmatpush1.bf16.msra.mxu0 0
          %580 = vmatprep.subr.bf16.mxu0 0
          %581 = vmatpush1.bf16.msra.mxu0 0
          %582 = vmatprep.subr.bf16.mxu0 0
          %583 = vmatpush1.bf16.msra.mxu0 0
          %584 = vmatprep.subr.bf16.mxu0 0
          %585 = vmatpush1.bf16.msra.mxu0 0
          %586 = vmatprep.subr.bf16.mxu0 0
          %587 = vmatpush1.bf16.msra.mxu0 0
          %588 = vmatprep.subr.bf16.mxu0 0
          %589 = vmatpush1.bf16.msra.mxu0 0
          %590 = vmatprep.subr.bf16.mxu0 0
          %591 = vmatpush1.bf16.msra.mxu0 0
          %592 = vmatprep.subr.bf16.mxu0 0
          %593 = vmatpush1.bf16.msra.mxu0 0
          %594 = vmatprep.mubr.bf16.mxu0 0
          %595 = vmatmul.mubr.bf16.gmra.mrb[0].mxu0 %v506
          %v596 = vpop.f32.mrb[0].mxu0
          %v597 = vadd.f32 0.0, %v596
          %v598 = vpop.f32.mrb[0].mxu0
          %v599 = vpop.f32.mrb[0].mxu0
          %v600 = vadd.f32 0.0, %v599
          %v601 = vpop.f32.mrb[0].mxu0
          %602 = vmatprep.mubr.bf16.mxu0 0
          %603 = vmatmul.mubr.bf16.gmra.mrb[0].mxu0 %v507
          %v604 = vpop.f32.mrb[0].mxu0
          %v605 = vadd.f32 0.0, %v604
          %v606 = vpop.f32.mrb[0].mxu0
          %v607 = vpop.f32.mrb[0].mxu0
          %v608 = vadd.f32 0.0, %v607
          %v609 = vpop.f32.mrb[0].mxu0
          %610 = vmatprep.mubr.bf16.mxu0 0
          %611 = vmatmul.mubr.bf16.gmra.mrb[0].mxu0 %v508
          %v612 = vpop.f32.mrb[0].mxu0
          %v613 = vadd.f32 0.0, %v612
          %v614 = vpop.f32.mrb[0].mxu0
          %v615 = vpop.f32.mrb[0].mxu0
          %v616 = vadd.f32 0.0, %v615
          %v617 = vpop.f32.mrb[0].mxu0
          %618 = vmatprep.mubr.bf16.mxu0 0
          %619 = vmatmul.mubr.bf16.gmra.mrb[0].mxu0 %v509
          %v620 = vpop.f32.mrb[0].mxu0
          %v621 = vadd.f32 0.0, %v620
          %v622 = vpop.f32.mrb[0].mxu0
          %v623 = vpop.f32.mrb[0].mxu0
          %v624 = vadd.f32 0.0, %v623
          %v625 = vpop.f32.mrb[0].mxu0
          %626 = vdwg.mxu0
          %v627 = vadd.f32 %v458, %v597
          %v628 = vadd.f32 %v459, %v600
          %v629 = vadd.f32 %v460, %v605
          %v630 = vadd.f32 %v461, %v608
          %v631 = vadd.f32 %v462, %v613
          %v632 = vadd.f32 %v463, %v616
          %v633 = vadd.f32 %v464, %v621
          %v634 = vadd.f32 %v465, %v624
          %635 = vst [vmem:[#allocation2] sm:$0xff] %v627
          %636 = vst [vmem:[#allocation2 + $0x8] sm:$0xff] %v628
          %637 = vst [vmem:[#allocation2 + $0x10] sm:$0xff] %v629
          %638 = vst [vmem:[#allocation2 + $0x18] sm:$0xff] %v630
          %639 = vst [vmem:[#allocation2 + $0x20] sm:$0xff] %v631
          %640 = vst [vmem:[#allocation2 + $0x28] sm:$0xff] %v632
          %641 = vst [vmem:[#allocation2 + $0x30] sm:$0xff] %v633
          %642 = vst [vmem:[#allocation2 + $0x38] sm:$0xff] %v634
        $region48: #{bottleneck_forward.5} parent=39 // pred_fallthru
          _
        %p643 = scmp.ge.s32.totalorder %s26, 1
        // Predicated region
        $region49: #{bottleneck_forward.5} parent=39 // pred_check
          %p644 = pneg %p643
        $region50: #{bottleneck_forward.5} parent=39 // pred_check_branch
          %646 = sbr.rel (%p644) target = $region52
        $region51: #{bottleneck_forward.5} parent=39 // pred_region
          %v647 = vld [vmem:[#allocation2] sm:$0xff]
          %v648 = vld [vmem:[#allocation2 + $0x8] sm:$0xff]
          %v649 = vld [vmem:[#allocation2 + $0x10] sm:$0xff]
          %v650 = vld [vmem:[#allocation2 + $0x18] sm:$0xff]
          %v651 = vld [vmem:[#allocation2 + $0x20] sm:$0xff]
          %v652 = vld [vmem:[#allocation2 + $0x28] sm:$0xff]
          %v653 = vld [vmem:[#allocation2 + $0x30] sm:$0xff]
          %v654 = vld [vmem:[#allocation2 + $0x38] sm:$0xff]
          %v655 = vld [vmem:[%s417] sm:$0xf]
          %v656 = vld [vmem:[%s417 + $0x4] sm:$0xf]
          %v657 = vld [vmem:[%s417 + $0x8] sm:$0xf]
          %v658 = vld [vmem:[%s417 + $0xc] sm:$0xf]
          %v659 = vld [vmem:[%s417 + $0x10] sm:$0xf]
          %v660 = vld [vmem:[%s417 + $0x14] sm:$0xf]
          %v661 = vld [vmem:[%s417 + $0x18] sm:$0xf]
          %v662 = vld [vmem:[%s417 + $0x1c] sm:$0xf]
          %v663 = vld [vmem:[%s432] sm:$0xf]
          %v664 = vld [vmem:[%s432 + $0x4] sm:$0xf]
          %v665 = vld [vmem:[%s432 + $0x8] sm:$0xf]
          %v666 = vld [vmem:[%s432 + $0xc] sm:$0xf]
          %v667 = vld [vmem:[%s432 + $0x10] sm:$0xf]
          %v668 = vld [vmem:[%s432 + $0x14] sm:$0xf]
          %v669 = vld [vmem:[%s432 + $0x18] sm:$0xf]
          %v670 = vld [vmem:[%s432 + $0x1c] sm:$0xf]
          %v671 = vld [vmem:[%s432 + $0x20] sm:$0xf]
          %v672 = vld [vmem:[%s432 + $0x24] sm:$0xf]
          %v673 = vld [vmem:[%s432 + $0x28] sm:$0xf]
          %v674 = vld [vmem:[%s432 + $0x2c] sm:$0xf]
          %v675 = vld [vmem:[%s432 + $0x30] sm:$0xf]
          %v676 = vld [vmem:[%s432 + $0x34] sm:$0xf]
          %v677 = vld [vmem:[%s432 + $0x38] sm:$0xf]
          %v678 = vld [vmem:[%s432 + $0x3c] sm:$0xf]
          %v687 = vunpack.c.l.b16 %v655
          %v688 = vunpack.c.l.b16 %v656
          %v689 = vunpack.c.l.b16 %v657
          %v690 = vunpack.c.l.b16 %v658
          %v691 = vunpack.c.l.b16 %v659
          %v692 = vunpack.c.l.b16 %v660
          %v693 = vunpack.c.l.b16 %v661
          %v694 = vunpack.c.l.b16 %v662
          %v695 = vpack.c.b16 %v688, %v687
          %v696 = vpack.c.b16 %v690, %v689
          %v697 = vpack.c.b16 %v692, %v691
          %v698 = vpack.c.b16 %v694, %v693
          %v719 = vunpack.c.l.b16 %v663
          %v720 = vunpack.c.l.b16 %v664
          %v721 = vunpack.c.l.b16 %v665
          %v722 = vunpack.c.l.b16 %v666
          %v723 = vunpack.c.l.b16 %v667
          %v724 = vunpack.c.l.b16 %v668
          %v725 = vunpack.c.l.b16 %v669
          %v726 = vunpack.c.l.b16 %v670
          %v727 = vunpack.c.l.b16 %v671
          %v728 = vunpack.c.l.b16 %v672
          %v729 = vunpack.c.l.b16 %v673
          %v730 = vunpack.c.l.b16 %v674
          %v731 = vunpack.c.l.b16 %v675
          %v732 = vunpack.c.l.b16 %v676
          %v733 = vunpack.c.l.b16 %v677
          %v734 = vunpack.c.l.b16 %v678
          %v735 = vpack.c.b16 %v720, %v719
          %v736 = vpack.c.b16 %v722, %v721
          %v737 = vpack.c.b16 %v724, %v723
          %v738 = vpack.c.b16 %v726, %v725
          %v739 = vpack.c.b16 %v728, %v727
          %v740 = vpack.c.b16 %v730, %v729
          %v741 = vpack.c.b16 %v732, %v731
          %v742 = vpack.c.b16 %v734, %v733
          %751 = vmatprep.subr.bf16.mxu0 0
          %752 = vmatpush1.bf16.msra.mxu0 %v735
          %753 = vmatprep.subr.bf16.mxu0 0
          %754 = vmatpush1.bf16.msra.mxu0 %v736
          %755 = vmatprep.subr.bf16.mxu0 0
          %756 = vmatpush1.bf16.msra.mxu0 %v737
          %757 = vmatprep.subr.bf16.mxu0 0
          %758 = vmatpush1.bf16.msra.mxu0 %v738
          %759 = vmatprep.subr.bf16.mxu0 0
          %760 = vmatpush1.bf16.msra.mxu0 %v739
          %761 = vmatprep.subr.bf16.mxu0 0
          %762 = vmatpush1.bf16.msra.mxu0 %v740
          %763 = vmatprep.subr.bf16.mxu0 0
          %764 = vmatpush1.bf16.msra.mxu0 %v741
          %765 = vmatprep.subr.bf16.mxu0 0
          %766 = vmatpush1.bf16.msra.mxu0 %v742
          %767 = vmatprep.subr.bf16.mxu0 0
          %768 = vmatpush1.bf16.msra.mxu0 0
          %769 = vmatprep.subr.bf16.mxu0 0
          %770 = vmatpush1.bf16.msra.mxu0 0
          %771 = vmatprep.subr.bf16.mxu0 0
          %772 = vmatpush1.bf16.msra.mxu0 0
          %773 = vmatprep.subr.bf16.mxu0 0
          %774 = vmatpush1.bf16.msra.mxu0 0
          %775 = vmatprep.subr.bf16.mxu0 0
          %776 = vmatpush1.bf16.msra.mxu0 0
          %777 = vmatprep.subr.bf16.mxu0 0
          %778 = vmatpush1.bf16.msra.mxu0 0
          %779 = vmatprep.subr.bf16.mxu0 0
          %780 = vmatpush1.bf16.msra.mxu0 0
          %781 = vmatprep.subr.bf16.mxu0 0
          %782 = vmatpush1.bf16.msra.mxu0 0
          %783 = vmatprep.mubr.bf16.mxu0 0
          %784 = vmatmul.mubr.bf16.gmra.mrb[0].mxu0 %v695
          %v785 = vpop.f32.mrb[0].mxu0
          %v786 = vadd.f32 0.0, %v785
          %v787 = vpop.f32.mrb[0].mxu0
          %v788 = vpop.f32.mrb[0].mxu0
          %v789 = vadd.f32 0.0, %v788
          %v790 = vpop.f32.mrb[0].mxu0
          %791 = vmatprep.mubr.bf16.mxu0 0
          %792 = vmatmul.mubr.bf16.gmra.mrb[0].mxu0 %v696
          %v793 = vpop.f32.mrb[0].mxu0
          %v794 = vadd.f32 0.0, %v793
          %v795 = vpop.f32.mrb[0].mxu0
          %v796 = vpop.f32.mrb[0].mxu0
          %v797 = vadd.f32 0.0, %v796
          %v798 = vpop.f32.mrb[0].mxu0
          %799 = vmatprep.mubr.bf16.mxu0 0
          %800 = vmatmul.mubr.bf16.gmra.mrb[0].mxu0 %v697
          %v801 = vpop.f32.mrb[0].mxu0
          %v802 = vadd.f32 0.0, %v801
          %v803 = vpop.f32.mrb[0].mxu0
          %v804 = vpop.f32.mrb[0].mxu0
          %v805 = vadd.f32 0.0, %v804
          %v806 = vpop.f32.mrb[0].mxu0
          %807 = vmatprep.mubr.bf16.mxu0 0
          %808 = vmatmul.mubr.bf16.gmra.mrb[0].mxu0 %v698
          %v809 = vpop.f32.mrb[0].mxu0
          %v810 = vadd.f32 0.0, %v809
          %v811 = vpop.f32.mrb[0].mxu0
          %v812 = vpop.f32.mrb[0].mxu0
          %v813 = vadd.f32 0.0, %v812
          %v814 = vpop.f32.mrb[0].mxu0
          %815 = vdwg.mxu0
          %v816 = vadd.f32 %v647, %v786
          %v817 = vadd.f32 %v648, %v789
          %v818 = vadd.f32 %v649, %v794
          %v819 = vadd.f32 %v650, %v797
          %v820 = vadd.f32 %v651, %v802
          %v821 = vadd.f32 %v652, %v805
          %v822 = vadd.f32 %v653, %v810
          %v823 = vadd.f32 %v654, %v813
          %824 = vst [vmem:[#allocation2] sm:$0xff] %v816
          %825 = vst [vmem:[#allocation2 + $0x8] sm:$0xff] %v817
          %826 = vst [vmem:[#allocation2 + $0x10] sm:$0xff] %v818
          %827 = vst [vmem:[#allocation2 + $0x18] sm:$0xff] %v819
          %828 = vst [vmem:[#allocation2 + $0x20] sm:$0xff] %v820
          %829 = vst [vmem:[#allocation2 + $0x28] sm:$0xff] %v821
          %830 = vst [vmem:[#allocation2 + $0x30] sm:$0xff] %v822
          %831 = vst [vmem:[#allocation2 + $0x38] sm:$0xff] %v823
        $region52: #{bottleneck_forward.5} parent=39 // pred_fallthru
          _
        %p832 = scmp.eq.s32.totalorder %s26, 1
        // Predicated region
        $region53: #{bottleneck_forward.5} parent=39 // pred_check
          %p833 = pneg %p832
        $region54: #{bottleneck_forward.5} parent=39 // pred_check_branch
          %835 = sbr.rel (%p833) target = $region56
        $region55: #{bottleneck_forward.5} parent=39 // pred_region
          %v836 = vld [vmem:[#allocation2] sm:$0xff]
          %v837 = vld [vmem:[#allocation2 + $0x8] sm:$0xff]
          %v838 = vld [vmem:[#allocation2 + $0x10] sm:$0xff]
          %v839 = vld [vmem:[#allocation2 + $0x18] sm:$0xff]
          %v840 = vld [vmem:[#allocation2 + $0x20] sm:$0xff]
          %v841 = vld [vmem:[#allocation2 + $0x28] sm:$0xff]
          %v842 = vld [vmem:[#allocation2 + $0x30] sm:$0xff]
          %v843 = vld [vmem:[#allocation2 + $0x38] sm:$0xff]
          %v844 = vld [vmem:[%s439] sm:$0x1]
          %v846 = vlaneseq
          %v847 = vshrl.u32 %v846, 7
          %v848 = vsub.s32 0, %v847
          %v849 = vrot.slane %v844, %v848
          %v851 = vadd.f32 %v836, %v849
          %v852 = vadd.f32 %v837, %v849
          %v853 = vadd.f32 %v838, %v849
          %v854 = vadd.f32 %v839, %v849
          %v855 = vadd.f32 %v840, %v849
          %v856 = vadd.f32 %v841, %v849
          %v857 = vadd.f32 %v842, %v849
          %v858 = vadd.f32 %v843, %v849
          %v859 = vmax.f32 %v851, 0.0
          %v860 = vmax.f32 %v852, 0.0
          %v861 = vmax.f32 %v853, 0.0
          %v862 = vmax.f32 %v854, 0.0
          %v863 = vmax.f32 %v855, 0.0
          %v864 = vmax.f32 %v856, 0.0
          %v865 = vmax.f32 %v857, 0.0
          %v866 = vmax.f32 %v858, 0.0
          %867 = vst [vmem:[%s380] sm:$0xff] %v859
          %868 = vst [vmem:[%s380 + $0x8] sm:$0xff] %v860
          %869 = vst [vmem:[%s380 + $0x10] sm:$0xff] %v861
          %870 = vst [vmem:[%s380 + $0x18] sm:$0xff] %v862
          %871 = vst [vmem:[%s380 + $0x20] sm:$0xff] %v863
          %872 = vst [vmem:[%s380 + $0x28] sm:$0xff] %v864
          %873 = vst [vmem:[%s380 + $0x30] sm:$0xff] %v865
          %874 = vst [vmem:[%s380 + $0x38] sm:$0xff] %v866
        $region56: #{bottleneck_forward.5} parent=39 // pred_fallthru
          _
        %s875 = sand.u32 %s206, 1
        %s876 = scalar_lea.sflag [#allocation4], %s875
        %s877 = sand.u32 %s206, 1
        %s878 = smul.addr %s877, 64
        %s879 = scalar_lea.vmem [#allocation3], %s878
        // Predicated region
        $region57: #{bottleneck_forward.5} parent=39 // pred_check
          %p880 = pneg %p216
        $region58: #{bottleneck_forward.5} parent=39 // pred_check_branch
          %882 = sbr.rel (%p880) target = $region60
        $region59: #{bottleneck_forward.5} parent=39 // pred_region
          %s883 = smul.u32 8, %s24
          %s885 = ssub.s32 1024, 1024
          %886 = vsyncadd %s876, %s885
          %s887 = sadd.s32 %s25, %s883
          %s888 = smul.addr %s887, 128
          %s889 = scalar_lea.hbm %s5, %s888
          %s890 = sshll.u32 %s879, 4
          %s891 = int_to_ptr.vmem [resolvable:$true] %s890
          %896 = dma.vmem_to_hbm [thread:$0]  %s891, 1024, %s889, %s876, 128, 128, 8
        $region60: #{bottleneck_forward.5} parent=39 // pred_fallthru
          _
      $region40: #{bottleneck_forward.5} parent=5 // pred_fallthru
        _
      %p897 = scmp.le.s32.totalorder 2, %s14
      // Predicated region
      $region61: #{bottleneck_forward.5} parent=5 // pred_check
        %p898 = pneg %p897
      $region62: #{bottleneck_forward.5} parent=5 // pred_check_branch
        %900 = sbr.rel (%p898) target = $region64
      $region63: #{bottleneck_forward.5} parent=5 // pred_region
        %s901 = ssub.s32 %s14, 2
        // Predicated region
        $region65: #{bottleneck_forward.5} parent=63 // pred_check
          %p902 = pneg %p222
        $region66: #{bottleneck_forward.5} parent=63 // pred_check_branch
          %904 = sbr.rel (%p902) target = $region68
        $region67: #{bottleneck_forward.5} parent=63 // pred_region
          %s905 = sand.u32 %s207, 1
          %s906 = scalar_lea.sflag [#allocation4], %s905
          %s907 = sand.u32 %s207, 1
          %s908 = smul.addr %s907, 64
          %s909 = scalar_lea.vmem [#allocation3], %s908
          %910 = dma.done %s906, 1024
        $region68: #{bottleneck_forward.5} parent=63 // pred_fallthru
          _
      $region64: #{bottleneck_forward.5} parent=5 // pred_fallthru
        _
    $region6: #{bottleneck_forward.5} parent=1 // loop_footer
      %s18 = sadd.s32 1, %s14
    $region7: #{bottleneck_forward.5} parent=1 // loop_footer_branch
      %13 = sbr.rel target = $region3
    $region8: #{bottleneck_forward.5} parent=1 // loop_exit
      _
    %911 = vsyncpa [#allocation4], 1
    %s912 = scalar_lea.sflag [#allocation4], 1
    %913 = vsyncpa %s912, 1

</llo_original>
